<compile_context>
chip_gen: v6e
topology: v6e:2x2x1
jax: 0.10.0
libtpu: 0.0.40
codegen_flags: <defaults>
</compile_context>

<pallas_src>
import functools
import math

import numpy as np

import jax
import jax.numpy as jnp
from jax import lax
from jax.experimental import pallas as pl
from jax.experimental.pallas import tpu as pltpu


# ----------------------------------------------------------------------------
# GELU (tanh approximation; exact-erf F.gelu differs by < ~3e-4 abs)
# ----------------------------------------------------------------------------
_GELU_C = math.sqrt(2.0 / math.pi)


def _gelu_tanh(x):
    return 0.5 * x * (1.0 + jnp.tanh(_GELU_C * (x + 0.044715 * (x * x * x))))


# ----------------------------------------------------------------------------
# host-side precomputed 3x3 'SAME' boundary masks (shared by both convs)
# ----------------------------------------------------------------------------
def _conv_tap_masks(H, W, Bt):
    """(8, Bt*H*W) float32 0/1 masks for the 8 non-centre taps, in tap order."""
    n = H * W
    pos = np.arange(Bt * n)
    row = (pos % n) // W
    col = pos % W                       # n is a multiple of W
    masks = []
    for di in (-1, 0, 1):
        for dj in (-1, 0, 1):
            if di == 0 and dj == 0:
                continue
            ok = ((row + di >= 0) & (row + di < H) &
                  (col + dj >= 0) & (col + dj < W))
            masks.append(ok)
    return np.stack(masks).astype(np.float32)


# ----------------------------------------------------------------------------
# Fused SFG_MSA kernel (one grid step per batch tile of Bt images)
# ----------------------------------------------------------------------------
def _sfg_msa_kernel(x_ref, wall_ref, wp_ref, bp_ref, w1_ref, w2_ref, mask_ref,
                    rs_ref, o_ref, *, H, W, D, Co, Bt):
    f32 = jnp.float32
    N = H * W
    NT = Bt * N

    x = x_ref[...]                                                   # (C, NT)

    # One MXU matmul for the whole batch tile; rows [0:D)=q, [D:2D)=k,
    # [2D:3D)=v, [3D:3D+Co)=v replicated per grouped-conv output channel
    # (replication pre-folded into the packed weights).
    qkvr = jnp.dot(wall_ref[...], x, preferred_element_type=f32)     # (3D+Co, NT)

    rs = rs_ref[0]
    y_parts = []
    for b in range(Bt):                 # static; per-image channel attention
        lo, hi = b * N, (b + 1) * N
        qb = qkvr[0:D, lo:hi]
        kb = qkvr[D:2 * D, lo:hi]
        vb = qkvr[2 * D:3 * D, lo:hi]
        # F.normalize(., dim=-1) on (d, n): per-channel L2 over tokens (lanes);
        # rsqrt(max(ss, eps^2)) == 1 / max(sqrt(ss), eps) with eps = 1e-12.
        qn = qb * lax.rsqrt(jnp.maximum(jnp.sum(qb * qb, -1, keepdims=True),
                                        1e-24))
        kn = kb * lax.rsqrt(jnp.maximum(jnp.sum(kb * kb, -1, keepdims=True),
                                        1e-24))
        # attn[i, j] = sum_n kn[i, n] * qn[j, n]   (== k @ q^T in torch layout)
        attn = lax.dot_general(kn, qn, (((1,), (1,)), ((), ())),
                               preferred_element_type=f32) * rs       # (D, D)
        attn = attn - jnp.max(attn, axis=-1, keepdims=True)
        e = jnp.exp(attn)
        attn = e * pl.reciprocal(jnp.sum(e, axis=-1, keepdims=True),
                                 approx=False)
        y_parts.append(jnp.dot(attn, vb, preferred_element_type=f32))  # (D, N)
    y = y_parts[0] if Bt == 1 else jnp.concatenate(y_parts, axis=1)    # (D, NT)

    out_c = (jnp.dot(wp_ref[...], y, preferred_element_type=f32)
             + bp_ref[...])                                            # (Co, NT)

    v_rep = qkvr[3 * D:3 * D + Co]                                     # (Co, NT)
    masks = mask_ref[...]                                              # (8, NT)

    # 3x3 'SAME' conv = centre tap + 8 masked lane rolls (XLU) on the flat
    # (channels, Bt*H*W) image; the precomputed 0/1 masks zero both the image
    # boundaries and any cross-image wrap introduced by the folded batch axis.
    def dwconv3x3(img, w_ref, acc0=None):
        w = w_ref[...]                                                 # (Co, 9)
        acc = w[:, 4:5] * img                                          # centre
        if acc0 is not None:
            acc = acc0 + acc
        m = 0
        for di in (-1, 0, 1):
            for dj in (-1, 0, 1):
                if di == 0 and dj == 0:
                    continue
                tap = (di + 1) * 3 + (dj + 1)
                s = di * W + dj
                # shifted[:, p] == img[:, p + s]  (wraps are masked off)
                sh = pltpu.roll(img, (-s) % NT, axis=1)
                acc = acc + w[:, tap:tap + 1] * (sh * masks[m:m + 1, :])
                m += 1
        return acc

    t = dwconv3x3(v_rep, w1_ref)                 # grouped conv (rep. pre-folded)
    t = _gelu_tanh(t)
    o_ref[...] = dwconv3x3(t, w2_ref, acc0=out_c)   # depthwise conv + out_c


def sfg_msa_pallas(x_pix, x_dct, p):
    """SFG_MSA.forward: x_pix (B, H, W, dim_in) NHWC -> (B, H, W, dim_out)."""
    del x_dct                           # never read by the torch forward either
    B, H, W, C = x_pix.shape
    N = H * W
    D = p["wq"].shape[0]                # dim_head * heads (heads == 1)
    Co = p["wp"].shape[0]               # dim_out
    assert Co % D == 0, "pos_emb grouped conv needs dim_out % dim_head == 0"
    assert D % 8 == 0, "keep q/k/v/v_rep row slices sublane-aligned"
    mult = Co // D

    # Batch tile: fold the batch into the lane axis, but keep 2 parallel grid
    # steps when possible so both v7x TensorCores get work (harmless on
    # v5e/v6e, where the grid is a serial loop).
    if B >= 2 and B % 2 == 0 and ((B // 2) * N) % 128 == 0:
        Bt = B // 2
    else:
        Bt = B                          # fold everything into one step
    G = B // Bt
    NT = Bt * N

    # Pack projections: [wq; wk; wv; wv replicated per grouped-conv out-chan].
    rep_idx = jnp.arange(Co) // mult
    w_all = jnp.concatenate([p["wq"], p["wk"], p["wv"], p["wv"][rep_idx]], 0)

    # Channel-major with batch folded into the token/lane axis: x_cm[c, b*N+n].
    x_cm = x_pix.reshape(B, N, C).transpose(2, 0, 1).reshape(C, B * N)

    bp = p["bp"].reshape(Co, 1)
    w1f = p["w1"].reshape(Co, 9)
    w2f = p["w2"].reshape(Co, 9)
    rs = p["rescale"].reshape(1)        # heads == 1 -> one scalar
    masks = jnp.asarray(_conv_tap_masks(H, W, Bt))

    kernel = functools.partial(_sfg_msa_kernel, H=H, W=W, D=D, Co=Co, Bt=Bt)
    fixed = lambda shape: pl.BlockSpec(shape, lambda i: (0,) * len(shape))

    out_cm = pl.pallas_call(
        kernel,
        out_shape=jax.ShapeDtypeStruct((Co, B * N), jnp.float32),
        grid=(G,),
        in_specs=[
            pl.BlockSpec((C, NT), lambda i: (0, i)),             # x (chan-major)
            fixed((3 * D + Co, C)),                              # packed qkv+rep
            fixed((Co, D)),                                      # wp
            fixed((Co, 1)),                                      # bp
            fixed((Co, 9)),                                      # w1
            fixed((Co, 9)),                                      # w2
            fixed((8, NT)),                                      # conv tap masks
            pl.BlockSpec(memory_space=pltpu.MemorySpace.SMEM),   # rescale
        ],
        out_specs=pl.BlockSpec((Co, NT), lambda i: (0, i)),
        compiler_params=pltpu.CompilerParams(
            dimension_semantics=("parallel",)),
    )(x_cm, w_all, p["wp"], bp, w1f, w2f, masks, rs)

    # Layout plumbing only (lane-dense channel-major store -> NHWC).
    # TODO(synk): skip this transpose if the consumer accepts channel-major.
    return out_cm.reshape(Co, B, H, W).transpose(1, 2, 3, 0)


# ----------------------------------------------------------------------------
# Pure-JAX reference (direct transcription of the PyTorch forward, exact GELU)
# ----------------------------------------------------------------------------
def ref_sfg_msa(x_pix, x_dct, p):
    del x_dct
    b, h, w, c = x_pix.shape
    n = h * w
    hp = lax.Precision.HIGHEST
    x = x_pix.reshape(b, n, c)
    q = jnp.einsum("bnc,dc->bnd", x, p["wq"], precision=hp)
    k = jnp.einsum("bnc,dc->bnd", x, p["wk"], precision=hp)
    v = jnp.einsum("bnc,dc->bnd", x, p["wv"], precision=hp)
    qT, kT, vT = (t.transpose(0, 2, 1) for t in (q, k, v))          # (b, d, n)

    def l2n(t):
        return t / jnp.maximum(
            jnp.sqrt(jnp.sum(t * t, axis=-1, keepdims=True)), 1e-12)

    attn = jnp.einsum("bdn,ben->bde", l2n(kT), l2n(qT),
                      precision=hp) * p["rescale"][0, 0, 0]
    attn = jax.nn.softmax(attn, axis=-1)
    o = jnp.einsum("bde,ben->bdn", attn, vT, precision=hp)
    xo = o.transpose(0, 2, 1)
    out_c = jnp.einsum("bnd,od->bno", xo, p["wp"], precision=hp) + p["bp"]
    out_c = out_c.reshape(b, h, w, -1)

    v_img = vT.reshape(b, -1, h, w)
    dn = ("NCHW", "OIHW", "NCHW")
    t = lax.conv_general_dilated(v_img, p["w1"], (1, 1), "SAME",
                                 feature_group_count=v_img.shape[1],
                                 dimension_numbers=dn, precision=hp)
    t = 0.5 * t * (1.0 + jax.scipy.special.erf(t / jnp.sqrt(2.0)))
    t = lax.conv_general_dilated(t, p["w2"], (1, 1), "SAME",
                                 feature_group_count=t.shape[1],
                                 dimension_numbers=dn, precision=hp)
    out_p = t.transpose(0, 2, 3, 1)
    return out_c + out_p


# ----------------------------------------------------------------------------
# deterministic parameter init (shapes from SFG_MSA.__init__)
# ----------------------------------------------------------------------------
def init_params(key, dim_in, dim_head, dim_out, heads):
    assert heads == 1, "SFG_MSA's pos_emb reshape requires heads == 1"
    assert dim_out % dim_head == 0
    d = dim_head * heads
    ks = jax.random.split(key, 8)
    return dict(
        wq=0.2 * jax.random.normal(ks[0], (d, dim_in), jnp.float32),
        wk=0.2 * jax.random.normal(ks[1], (d, dim_in), jnp.float32),
        wv=0.2 * jax.random.normal(ks[2], (d, dim_in), jnp.float32),
        wp=0.2 * jax.random.normal(ks[3], (dim_out, d), jnp.float32),
        bp=0.1 * jax.random.normal(ks[4], (dim_out,), jnp.float32),
        rescale=jax.random.uniform(ks[5], (heads, 1, 1), jnp.float32, 0.5, 1.5),
        w1=0.2 * jax.random.normal(ks[6], (dim_out, 1, 3, 3), jnp.float32),
        w2=0.2 * jax.random.normal(ks[7], (dim_out, 1, 3, 3), jnp.float32),
    )


if __name__ == "__main__":
    # SFG_MSA(dim_in=16, dim_head=8, dim_out=16, heads=1); x_pix is NHWC.
    B, H, W = 2, 16, 16
    dim_in, dim_head, dim_out, heads = 16, 8, 16, 1

    key = jax.random.PRNGKey(0)
    kx, kd, kp = jax.random.split(key, 3)
    x_pix = jax.random.normal(kx, (B, H, W, dim_in), jnp.float32)
    x_dct = jax.random.normal(kd, (B, H, W, dim_in), jnp.float32)   # unused
    params = init_params(kp, dim_in, dim_head, dim_out, heads)

    out = jax.block_until_ready(jax.jit(sfg_msa_pallas)(x_pix, x_dct, params))
    assert out.shape == (B, H, W, dim_out), out.shape

    ref = jax.block_until_ready(ref_sfg_msa(x_pix, x_dct, params))
    max_err = float(jnp.max(jnp.abs(out - ref)))
    assert max_err < 2e-3, f"mismatch vs reference, max abs err = {max_err}"
    print("KERNEL_OK")
</pallas_src>

<mosaic_0001>
module attributes {stable_mosaic.version = 11 : i64} {
  func.func @_sfg_msa_kernel(%arg0: i32, %arg1: memref<16x256xf32, #tpu.memory_space<vmem>>, %arg2: memref<40x16xf32, #tpu.memory_space<vmem>>, %arg3: memref<16x8xf32, #tpu.memory_space<vmem>>, %arg4: memref<16x1xf32, #tpu.memory_space<vmem>>, %arg5: memref<16x9xf32, #tpu.memory_space<vmem>>, %arg6: memref<16x9xf32, #tpu.memory_space<vmem>>, %arg7: memref<8x256xf32, #tpu.memory_space<vmem>>, %arg8: memref<1xf32, #tpu.memory_space<smem>>, %arg9: memref<16x256xf32, #tpu.memory_space<vmem>>) attributes {dimension_semantics = [#tpu.dimension_semantics<parallel>], iteration_bounds = array<i64: 2>, scalar_prefetch = 0 : i64, scratch_operands = 0 : i64, tpu.core_type = #tpu.core_type<tc>, window_params = [{transform_indices = @transform_0, window_bounds = array<i64: 16, 256>}, {pipeline_mode = #tpu.pipeline_mode<synchronous>, transform_indices = @transform_1, window_bounds = array<i64: 40, 16>}, {pipeline_mode = #tpu.pipeline_mode<synchronous>, transform_indices = @transform_2, window_bounds = array<i64: 16, 8>}, {pipeline_mode = #tpu.pipeline_mode<synchronous>, transform_indices = @transform_3, window_bounds = array<i64: 16, 1>}, {pipeline_mode = #tpu.pipeline_mode<synchronous>, transform_indices = @transform_4, window_bounds = array<i64: 16, 9>}, {pipeline_mode = #tpu.pipeline_mode<synchronous>, transform_indices = @transform_5, window_bounds = array<i64: 16, 9>}, {pipeline_mode = #tpu.pipeline_mode<synchronous>, transform_indices = @transform_6, window_bounds = array<i64: 8, 256>}, {transform_indices = @transform_7, window_bounds = array<i64: 1>}, {transform_indices = @transform_8, window_bounds = array<i64: 16, 256>}]} {
    %c0 = arith.constant 0 : index
    %c0_0 = arith.constant 0 : index
    %0 = vector.load %arg1[%c0, %c0_0] : memref<16x256xf32, #tpu.memory_space<vmem>>, vector<16x256xf32>
    %c0_1 = arith.constant 0 : index
    %c0_2 = arith.constant 0 : index
    %1 = vector.load %arg2[%c0_1, %c0_2] : memref<40x16xf32, #tpu.memory_space<vmem>>, vector<40x16xf32>
    %cst = arith.constant dense<0.000000e+00> : vector<40x256xf32>
    %2 = tpu.matmul %1, %0, %cst {dimension_numbers = #tpu.dot_dimension_numbers<[1], [0], [0], [1], [0, 0, 1, 1], [], []>} : vector<40x16xf32>, vector<16x256xf32>, vector<40x256xf32> -> vector<40x256xf32>
    %c0_3 = arith.constant 0 : index
    %3 = memref.load %arg8[%c0_3] : memref<1xf32, #tpu.memory_space<smem>>
    %4 = vector.extract_strided_slice %2 {offsets = [0, 0], sizes = [8, 256], strides = [1, 1]} : vector<40x256xf32> to vector<8x256xf32>
    %5 = vector.extract_strided_slice %2 {offsets = [8, 0], sizes = [8, 256], strides = [1, 1]} : vector<40x256xf32> to vector<8x256xf32>
    %6 = vector.extract_strided_slice %2 {offsets = [16, 0], sizes = [8, 256], strides = [1, 1]} : vector<40x256xf32> to vector<8x256xf32>
    %7 = arith.mulf %4, %4 : vector<8x256xf32>
    %cst_4 = arith.constant dense<0.000000e+00> : vector<8xf32>
    %8 = vector.multi_reduction <add>, %7, %cst_4 [1] : vector<8x256xf32> to vector<8xf32>
    %9 = vector.shape_cast %8 : vector<8xf32> to vector<8x1xf32>
    %cst_5 = arith.constant 1.000000e-24 : f32
    %10 = vector.broadcast %cst_5 : f32 to vector<8x1xf32>
    %11 = arith.maximumf %9, %10 : vector<8x1xf32>
    %12 = math.rsqrt %11 : vector<8x1xf32>
    %13 = vector.broadcast %12 : vector<8x1xf32> to vector<8x256xf32>
    %14 = arith.mulf %4, %13 : vector<8x256xf32>
    %15 = arith.mulf %5, %5 : vector<8x256xf32>
    %cst_6 = arith.constant dense<0.000000e+00> : vector<8xf32>
    %16 = vector.multi_reduction <add>, %15, %cst_6 [1] : vector<8x256xf32> to vector<8xf32>
    %17 = vector.shape_cast %16 : vector<8xf32> to vector<8x1xf32>
    %cst_7 = arith.constant 1.000000e-24 : f32
    %18 = vector.broadcast %cst_7 : f32 to vector<8x1xf32>
    %19 = arith.maximumf %17, %18 : vector<8x1xf32>
    %20 = math.rsqrt %19 : vector<8x1xf32>
    %21 = vector.broadcast %20 : vector<8x1xf32> to vector<8x256xf32>
    %22 = arith.mulf %5, %21 : vector<8x256xf32>
    %cst_8 = arith.constant dense<0.000000e+00> : vector<8x8xf32>
    %23 = tpu.matmul %22, %14, %cst_8 {dimension_numbers = #tpu.dot_dimension_numbers<[1], [1], [0], [0], [0, 0, 1, 0], [], []>} : vector<8x256xf32>, vector<8x256xf32>, vector<8x8xf32> -> vector<8x8xf32>
    %24 = vector.broadcast %3 : f32 to vector<8x8xf32>
    %25 = arith.mulf %23, %24 : vector<8x8xf32>
    %cst_9 = arith.constant dense<0xFF800000> : vector<8xf32>
    %26 = vector.multi_reduction <maximumf>, %25, %cst_9 [1] : vector<8x8xf32> to vector<8xf32>
    %27 = vector.shape_cast %26 : vector<8xf32> to vector<8x1xf32>
    %28 = vector.broadcast %27 : vector<8x1xf32> to vector<8x8xf32>
    %29 = arith.subf %25, %28 : vector<8x8xf32>
    %30 = math.exp %29 : vector<8x8xf32>
    %cst_10 = arith.constant dense<0.000000e+00> : vector<8xf32>
    %31 = vector.multi_reduction <add>, %30, %cst_10 [1] : vector<8x8xf32> to vector<8xf32>
    %32 = vector.shape_cast %31 : vector<8xf32> to vector<8x1xf32>
    %33 = tpu.reciprocal %32 : vector<8x1xf32> -> vector<8x1xf32>
    %34 = vector.broadcast %33 : vector<8x1xf32> to vector<8x8xf32>
    %35 = arith.mulf %30, %34 : vector<8x8xf32>
    %cst_11 = arith.constant dense<0.000000e+00> : vector<8x256xf32>
    %36 = tpu.matmul %35, %6, %cst_11 {dimension_numbers = #tpu.dot_dimension_numbers<[1], [0], [0], [1], [0, 0, 1, 1], [], []>} : vector<8x8xf32>, vector<8x256xf32>, vector<8x256xf32> -> vector<8x256xf32>
    %c0_12 = arith.constant 0 : index
    %c0_13 = arith.constant 0 : index
    %37 = vector.load %arg3[%c0_12, %c0_13] : memref<16x8xf32, #tpu.memory_space<vmem>>, vector<16x8xf32>
    %cst_14 = arith.constant dense<0.000000e+00> : vector<16x256xf32>
    %38 = tpu.matmul %37, %36, %cst_14 {dimension_numbers = #tpu.dot_dimension_numbers<[1], [0], [0], [1], [0, 0, 1, 1], [], []>} : vector<16x8xf32>, vector<8x256xf32>, vector<16x256xf32> -> vector<16x256xf32>
    %c0_15 = arith.constant 0 : index
    %c0_16 = arith.constant 0 : index
    %39 = vector.load %arg4[%c0_15, %c0_16] : memref<16x1xf32, #tpu.memory_space<vmem>>, vector<16x1xf32>
    %40 = vector.broadcast %39 : vector<16x1xf32> to vector<16x256xf32>
    %41 = arith.addf %38, %40 : vector<16x256xf32>
    %42 = vector.extract_strided_slice %2 {offsets = [24, 0], sizes = [16, 256], strides = [1, 1]} : vector<40x256xf32> to vector<16x256xf32>
    %c0_17 = arith.constant 0 : index
    %c0_18 = arith.constant 0 : index
    %43 = vector.load %arg7[%c0_17, %c0_18] : memref<8x256xf32, #tpu.memory_space<vmem>>, vector<8x256xf32>
    %c0_19 = arith.constant 0 : index
    %c0_20 = arith.constant 0 : index
    %44 = vector.load %arg5[%c0_19, %c0_20] : memref<16x9xf32, #tpu.memory_space<vmem>>, vector<16x9xf32>
    %45 = vector.extract_strided_slice %44 {offsets = [0, 4], sizes = [16, 1], strides = [1, 1]} : vector<16x9xf32> to vector<16x1xf32>
    %46 = vector.broadcast %45 : vector<16x1xf32> to vector<16x256xf32>
    %47 = arith.mulf %46, %42 : vector<16x256xf32>
    %c17_i32 = arith.constant 17 : i32
    %48 = tpu.dynamic_rotate %42 by %c17_i32 dim 1 : vector<16x256xf32>, i32 -> vector<16x256xf32>
    %49 = vector.extract_strided_slice %44 {offsets = [0, 0], sizes = [16, 1], strides = [1, 1]} : vector<16x9xf32> to vector<16x1xf32>
    %50 = vector.extract_strided_slice %43 {offsets = [0, 0], sizes = [1, 256], strides = [1, 1]} : vector<8x256xf32> to vector<1x256xf32>
    %51 = vector.broadcast %50 : vector<1x256xf32> to vector<16x256xf32>
    %52 = arith.mulf %48, %51 : vector<16x256xf32>
    %53 = vector.broadcast %49 : vector<16x1xf32> to vector<16x256xf32>
    %54 = arith.mulf %53, %52 : vector<16x256xf32>
    %55 = arith.addf %47, %54 : vector<16x256xf32>
    %c16_i32 = arith.constant 16 : i32
    %56 = tpu.dynamic_rotate %42 by %c16_i32 dim 1 : vector<16x256xf32>, i32 -> vector<16x256xf32>
    %57 = vector.extract_strided_slice %44 {offsets = [0, 1], sizes = [16, 1], strides = [1, 1]} : vector<16x9xf32> to vector<16x1xf32>
    %58 = vector.extract_strided_slice %43 {offsets = [1, 0], sizes = [1, 256], strides = [1, 1]} : vector<8x256xf32> to vector<1x256xf32>
    %59 = vector.broadcast %58 : vector<1x256xf32> to vector<16x256xf32>
    %60 = arith.mulf %56, %59 : vector<16x256xf32>
    %61 = vector.broadcast %57 : vector<16x1xf32> to vector<16x256xf32>
    %62 = arith.mulf %61, %60 : vector<16x256xf32>
    %63 = arith.addf %55, %62 : vector<16x256xf32>
    %c15_i32 = arith.constant 15 : i32
    %64 = tpu.dynamic_rotate %42 by %c15_i32 dim 1 : vector<16x256xf32>, i32 -> vector<16x256xf32>
    %65 = vector.extract_strided_slice %44 {offsets = [0, 2], sizes = [16, 1], strides = [1, 1]} : vector<16x9xf32> to vector<16x1xf32>
    %66 = vector.extract_strided_slice %43 {offsets = [2, 0], sizes = [1, 256], strides = [1, 1]} : vector<8x256xf32> to vector<1x256xf32>
    %67 = vector.broadcast %66 : vector<1x256xf32> to vector<16x256xf32>
    %68 = arith.mulf %64, %67 : vector<16x256xf32>
    %69 = vector.broadcast %65 : vector<16x1xf32> to vector<16x256xf32>
    %70 = arith.mulf %69, %68 : vector<16x256xf32>
    %71 = arith.addf %63, %70 : vector<16x256xf32>
    %c1_i32 = arith.constant 1 : i32
    %72 = tpu.dynamic_rotate %42 by %c1_i32 dim 1 : vector<16x256xf32>, i32 -> vector<16x256xf32>
    %73 = vector.extract_strided_slice %44 {offsets = [0, 3], sizes = [16, 1], strides = [1, 1]} : vector<16x9xf32> to vector<16x1xf32>
    %74 = vector.extract_strided_slice %43 {offsets = [3, 0], sizes = [1, 256], strides = [1, 1]} : vector<8x256xf32> to vector<1x256xf32>
    %75 = vector.broadcast %74 : vector<1x256xf32> to vector<16x256xf32>
    %76 = arith.mulf %72, %75 : vector<16x256xf32>
    %77 = vector.broadcast %73 : vector<16x1xf32> to vector<16x256xf32>
    %78 = arith.mulf %77, %76 : vector<16x256xf32>
    %79 = arith.addf %71, %78 : vector<16x256xf32>
    %c255_i32 = arith.constant 255 : i32
    %80 = tpu.dynamic_rotate %42 by %c255_i32 dim 1 : vector<16x256xf32>, i32 -> vector<16x256xf32>
    %81 = vector.extract_strided_slice %44 {offsets = [0, 5], sizes = [16, 1], strides = [1, 1]} : vector<16x9xf32> to vector<16x1xf32>
    %82 = vector.extract_strided_slice %43 {offsets = [4, 0], sizes = [1, 256], strides = [1, 1]} : vector<8x256xf32> to vector<1x256xf32>
    %83 = vector.broadcast %82 : vector<1x256xf32> to vector<16x256xf32>
    %84 = arith.mulf %80, %83 : vector<16x256xf32>
    %85 = vector.broadcast %81 : vector<16x1xf32> to vector<16x256xf32>
    %86 = arith.mulf %85, %84 : vector<16x256xf32>
    %87 = arith.addf %79, %86 : vector<16x256xf32>
    %c241_i32 = arith.constant 241 : i32
    %88 = tpu.dynamic_rotate %42 by %c241_i32 dim 1 : vector<16x256xf32>, i32 -> vector<16x256xf32>
    %89 = vector.extract_strided_slice %44 {offsets = [0, 6], sizes = [16, 1], strides = [1, 1]} : vector<16x9xf32> to vector<16x1xf32>
    %90 = vector.extract_strided_slice %43 {offsets = [5, 0], sizes = [1, 256], strides = [1, 1]} : vector<8x256xf32> to vector<1x256xf32>
    %91 = vector.broadcast %90 : vector<1x256xf32> to vector<16x256xf32>
    %92 = arith.mulf %88, %91 : vector<16x256xf32>
    %93 = vector.broadcast %89 : vector<16x1xf32> to vector<16x256xf32>
    %94 = arith.mulf %93, %92 : vector<16x256xf32>
    %95 = arith.addf %87, %94 : vector<16x256xf32>
    %c240_i32 = arith.constant 240 : i32
    %96 = tpu.dynamic_rotate %42 by %c240_i32 dim 1 : vector<16x256xf32>, i32 -> vector<16x256xf32>
    %97 = vector.extract_strided_slice %44 {offsets = [0, 7], sizes = [16, 1], strides = [1, 1]} : vector<16x9xf32> to vector<16x1xf32>
    %98 = vector.extract_strided_slice %43 {offsets = [6, 0], sizes = [1, 256], strides = [1, 1]} : vector<8x256xf32> to vector<1x256xf32>
    %99 = vector.broadcast %98 : vector<1x256xf32> to vector<16x256xf32>
    %100 = arith.mulf %96, %99 : vector<16x256xf32>
    %101 = vector.broadcast %97 : vector<16x1xf32> to vector<16x256xf32>
    %102 = arith.mulf %101, %100 : vector<16x256xf32>
    %103 = arith.addf %95, %102 : vector<16x256xf32>
    %c239_i32 = arith.constant 239 : i32
    %104 = tpu.dynamic_rotate %42 by %c239_i32 dim 1 : vector<16x256xf32>, i32 -> vector<16x256xf32>
    %105 = vector.extract_strided_slice %44 {offsets = [0, 8], sizes = [16, 1], strides = [1, 1]} : vector<16x9xf32> to vector<16x1xf32>
    %106 = vector.extract_strided_slice %43 {offsets = [7, 0], sizes = [1, 256], strides = [1, 1]} : vector<8x256xf32> to vector<1x256xf32>
    %107 = vector.broadcast %106 : vector<1x256xf32> to vector<16x256xf32>
    %108 = arith.mulf %104, %107 : vector<16x256xf32>
    %109 = vector.broadcast %105 : vector<16x1xf32> to vector<16x256xf32>
    %110 = arith.mulf %109, %108 : vector<16x256xf32>
    %111 = arith.addf %103, %110 : vector<16x256xf32>
    %cst_21 = arith.constant 5.000000e-01 : f32
    %112 = vector.broadcast %cst_21 : f32 to vector<16x256xf32>
    %113 = arith.mulf %112, %111 : vector<16x256xf32>
    %114 = arith.mulf %111, %111 : vector<16x256xf32>
    %115 = arith.mulf %114, %111 : vector<16x256xf32>
    %cst_22 = arith.constant 4.471500e-02 : f32
    %116 = vector.broadcast %cst_22 : f32 to vector<16x256xf32>
    %117 = arith.mulf %116, %115 : vector<16x256xf32>
    %118 = arith.addf %111, %117 : vector<16x256xf32>
    %cst_23 = arith.constant 0.797884583 : f32
    %119 = vector.broadcast %cst_23 : f32 to vector<16x256xf32>
    %120 = arith.mulf %119, %118 : vector<16x256xf32>
    %121 = math.tanh %120 : vector<16x256xf32>
    %cst_24 = arith.constant 1.000000e+00 : f32
    %122 = vector.broadcast %cst_24 : f32 to vector<16x256xf32>
    %123 = arith.addf %122, %121 : vector<16x256xf32>
    %124 = arith.mulf %113, %123 : vector<16x256xf32>
    %c0_25 = arith.constant 0 : index
    %c0_26 = arith.constant 0 : index
    %125 = vector.load %arg6[%c0_25, %c0_26] : memref<16x9xf32, #tpu.memory_space<vmem>>, vector<16x9xf32>
    %126 = vector.extract_strided_slice %125 {offsets = [0, 4], sizes = [16, 1], strides = [1, 1]} : vector<16x9xf32> to vector<16x1xf32>
    %127 = vector.broadcast %126 : vector<16x1xf32> to vector<16x256xf32>
    %128 = arith.mulf %127, %124 : vector<16x256xf32>
    %129 = arith.addf %41, %128 : vector<16x256xf32>
    %c17_i32_27 = arith.constant 17 : i32
    %130 = tpu.dynamic_rotate %124 by %c17_i32_27 dim 1 : vector<16x256xf32>, i32 -> vector<16x256xf32>
    %131 = vector.extract_strided_slice %125 {offsets = [0, 0], sizes = [16, 1], strides = [1, 1]} : vector<16x9xf32> to vector<16x1xf32>
    %132 = vector.extract_strided_slice %43 {offsets = [0, 0], sizes = [1, 256], strides = [1, 1]} : vector<8x256xf32> to vector<1x256xf32>
    %133 = vector.broadcast %132 : vector<1x256xf32> to vector<16x256xf32>
    %134 = arith.mulf %130, %133 : vector<16x256xf32>
    %135 = vector.broadcast %131 : vector<16x1xf32> to vector<16x256xf32>
    %136 = arith.mulf %135, %134 : vector<16x256xf32>
    %137 = arith.addf %129, %136 : vector<16x256xf32>
    %c16_i32_28 = arith.constant 16 : i32
    %138 = tpu.dynamic_rotate %124 by %c16_i32_28 dim 1 : vector<16x256xf32>, i32 -> vector<16x256xf32>
    %139 = vector.extract_strided_slice %125 {offsets = [0, 1], sizes = [16, 1], strides = [1, 1]} : vector<16x9xf32> to vector<16x1xf32>
    %140 = vector.extract_strided_slice %43 {offsets = [1, 0], sizes = [1, 256], strides = [1, 1]} : vector<8x256xf32> to vector<1x256xf32>
    %141 = vector.broadcast %140 : vector<1x256xf32> to vector<16x256xf32>
    %142 = arith.mulf %138, %141 : vector<16x256xf32>
    %143 = vector.broadcast %139 : vector<16x1xf32> to vector<16x256xf32>
    %144 = arith.mulf %143, %142 : vector<16x256xf32>
    %145 = arith.addf %137, %144 : vector<16x256xf32>
    %c15_i32_29 = arith.constant 15 : i32
    %146 = tpu.dynamic_rotate %124 by %c15_i32_29 dim 1 : vector<16x256xf32>, i32 -> vector<16x256xf32>
    %147 = vector.extract_strided_slice %125 {offsets = [0, 2], sizes = [16, 1], strides = [1, 1]} : vector<16x9xf32> to vector<16x1xf32>
    %148 = vector.extract_strided_slice %43 {offsets = [2, 0], sizes = [1, 256], strides = [1, 1]} : vector<8x256xf32> to vector<1x256xf32>
    %149 = vector.broadcast %148 : vector<1x256xf32> to vector<16x256xf32>
    %150 = arith.mulf %146, %149 : vector<16x256xf32>
    %151 = vector.broadcast %147 : vector<16x1xf32> to vector<16x256xf32>
    %152 = arith.mulf %151, %150 : vector<16x256xf32>
    %153 = arith.addf %145, %152 : vector<16x256xf32>
    %c1_i32_30 = arith.constant 1 : i32
    %154 = tpu.dynamic_rotate %124 by %c1_i32_30 dim 1 : vector<16x256xf32>, i32 -> vector<16x256xf32>
    %155 = vector.extract_strided_slice %125 {offsets = [0, 3], sizes = [16, 1], strides = [1, 1]} : vector<16x9xf32> to vector<16x1xf32>
    %156 = vector.extract_strided_slice %43 {offsets = [3, 0], sizes = [1, 256], strides = [1, 1]} : vector<8x256xf32> to vector<1x256xf32>
    %157 = vector.broadcast %156 : vector<1x256xf32> to vector<16x256xf32>
    %158 = arith.mulf %154, %157 : vector<16x256xf32>
    %159 = vector.broadcast %155 : vector<16x1xf32> to vector<16x256xf32>
    %160 = arith.mulf %159, %158 : vector<16x256xf32>
    %161 = arith.addf %153, %160 : vector<16x256xf32>
    %c255_i32_31 = arith.constant 255 : i32
    %162 = tpu.dynamic_rotate %124 by %c255_i32_31 dim 1 : vector<16x256xf32>, i32 -> vector<16x256xf32>
    %163 = vector.extract_strided_slice %125 {offsets = [0, 5], sizes = [16, 1], strides = [1, 1]} : vector<16x9xf32> to vector<16x1xf32>
    %164 = vector.extract_strided_slice %43 {offsets = [4, 0], sizes = [1, 256], strides = [1, 1]} : vector<8x256xf32> to vector<1x256xf32>
    %165 = vector.broadcast %164 : vector<1x256xf32> to vector<16x256xf32>
    %166 = arith.mulf %162, %165 : vector<16x256xf32>
    %167 = vector.broadcast %163 : vector<16x1xf32> to vector<16x256xf32>
    %168 = arith.mulf %167, %166 : vector<16x256xf32>
    %169 = arith.addf %161, %168 : vector<16x256xf32>
    %c241_i32_32 = arith.constant 241 : i32
    %170 = tpu.dynamic_rotate %124 by %c241_i32_32 dim 1 : vector<16x256xf32>, i32 -> vector<16x256xf32>
    %171 = vector.extract_strided_slice %125 {offsets = [0, 6], sizes = [16, 1], strides = [1, 1]} : vector<16x9xf32> to vector<16x1xf32>
    %172 = vector.extract_strided_slice %43 {offsets = [5, 0], sizes = [1, 256], strides = [1, 1]} : vector<8x256xf32> to vector<1x256xf32>
    %173 = vector.broadcast %172 : vector<1x256xf32> to vector<16x256xf32>
    %174 = arith.mulf %170, %173 : vector<16x256xf32>
    %175 = vector.broadcast %171 : vector<16x1xf32> to vector<16x256xf32>
    %176 = arith.mulf %175, %174 : vector<16x256xf32>
    %177 = arith.addf %169, %176 : vector<16x256xf32>
    %c240_i32_33 = arith.constant 240 : i32
    %178 = tpu.dynamic_rotate %124 by %c240_i32_33 dim 1 : vector<16x256xf32>, i32 -> vector<16x256xf32>
    %179 = vector.extract_strided_slice %125 {offsets = [0, 7], sizes = [16, 1], strides = [1, 1]} : vector<16x9xf32> to vector<16x1xf32>
    %180 = vector.extract_strided_slice %43 {offsets = [6, 0], sizes = [1, 256], strides = [1, 1]} : vector<8x256xf32> to vector<1x256xf32>
    %181 = vector.broadcast %180 : vector<1x256xf32> to vector<16x256xf32>
    %182 = arith.mulf %178, %181 : vector<16x256xf32>
    %183 = vector.broadcast %179 : vector<16x1xf32> to vector<16x256xf32>
    %184 = arith.mulf %183, %182 : vector<16x256xf32>
    %185 = arith.addf %177, %184 : vector<16x256xf32>
    %c239_i32_34 = arith.constant 239 : i32
    %186 = tpu.dynamic_rotate %124 by %c239_i32_34 dim 1 : vector<16x256xf32>, i32 -> vector<16x256xf32>
    %187 = vector.extract_strided_slice %125 {offsets = [0, 8], sizes = [16, 1], strides = [1, 1]} : vector<16x9xf32> to vector<16x1xf32>
    %188 = vector.extract_strided_slice %43 {offsets = [7, 0], sizes = [1, 256], strides = [1, 1]} : vector<8x256xf32> to vector<1x256xf32>
    %189 = vector.broadcast %188 : vector<1x256xf32> to vector<16x256xf32>
    %190 = arith.mulf %186, %189 : vector<16x256xf32>
    %191 = vector.broadcast %187 : vector<16x1xf32> to vector<16x256xf32>
    %192 = arith.mulf %191, %190 : vector<16x256xf32>
    %193 = arith.addf %185, %192 : vector<16x256xf32>
    %c0_35 = arith.constant 0 : index
    %c0_36 = arith.constant 0 : index
    %194 = vector.load %arg9[%c0_35, %c0_36] : memref<16x256xf32, #tpu.memory_space<vmem>>, vector<16x256xf32>
    tpu.vector_store %arg9[%c0_35, %c0_36], %193 {strides = array<i32>} : memref<16x256xf32, #tpu.memory_space<vmem>>, vector<16x256xf32>,
    return
  }
  func.func @transform_0(%arg0: i32) -> (i32, i32) {
    %c0_i32 = arith.constant 0 : i32
    %c0_i32_0 = arith.constant 0 : i32
    return %c0_i32, %arg0 : i32, i32
  }
  func.func @transform_1(%arg0: i32) -> (i32, i32) {
    %c0_i32 = arith.constant 0 : i32
    %c0_i32_0 = arith.constant 0 : i32
    %c0_i32_1 = arith.constant 0 : i32
    return %c0_i32, %c0_i32_0 : i32, i32
  }
  func.func @transform_2(%arg0: i32) -> (i32, i32) {
    %c0_i32 = arith.constant 0 : i32
    %c0_i32_0 = arith.constant 0 : i32
    %c0_i32_1 = arith.constant 0 : i32
    return %c0_i32, %c0_i32_0 : i32, i32
  }
  func.func @transform_3(%arg0: i32) -> (i32, i32) {
    %c0_i32 = arith.constant 0 : i32
    %c0_i32_0 = arith.constant 0 : i32
    %c0_i32_1 = arith.constant 0 : i32
    return %c0_i32, %c0_i32_0 : i32, i32
  }
  func.func @transform_4(%arg0: i32) -> (i32, i32) {
    %c0_i32 = arith.constant 0 : i32
    %c0_i32_0 = arith.constant 0 : i32
    %c0_i32_1 = arith.constant 0 : i32
    return %c0_i32, %c0_i32_0 : i32, i32
  }
  func.func @transform_5(%arg0: i32) -> (i32, i32) {
    %c0_i32 = arith.constant 0 : i32
    %c0_i32_0 = arith.constant 0 : i32
    %c0_i32_1 = arith.constant 0 : i32
    return %c0_i32, %c0_i32_0 : i32, i32
  }
  func.func @transform_6(%arg0: i32) -> (i32, i32) {
    %c0_i32 = arith.constant 0 : i32
    %c0_i32_0 = arith.constant 0 : i32
    %c0_i32_1 = arith.constant 0 : i32
    return %c0_i32, %c0_i32_0 : i32, i32
  }
  func.func @transform_7(%arg0: i32) -> i32 {
    %c0_i32 = arith.constant 0 : i32
    %c0_i32_0 = arith.constant 0 : i32
    return %c0_i32 : i32
  }
  func.func @transform_8(%arg0: i32) -> (i32, i32) {
    %c0_i32 = arith.constant 0 : i32
    %c0_i32_0 = arith.constant 0 : i32
    return %c0_i32, %arg0 : i32, i32
  }
}

</mosaic_0001>

<llo_original>
// kernel: sfg_msa_pallas.1
$region0: #{sfg_msa_pallas.1}
  #allocation0 [shape = 'u32[]', space=smem, size = 0x4, offset = 0x4, fixed_abs, tag = 'smem constant byte address 0x4 - core index']
  #allocation1 [shape = 'u32[144,128]{1,0:T(1,128)}', space=vmem, size = 0x12000, scoped, tag = 'internal scratch']
  #allocation2 [shape = 'f32[1]{0:T(128)S(6)}', space=smem, size = 0x200, scoped, tag = 'scoped memory for sfg_msa_pallas.1']
  %s0 = inlined_call_operand.vmem [shape: f32[16,512], index: 0, kind: input, shape index: {}]
  %s1 = inlined_call_operand.vmem [shape: f32[40,16], index: 1, kind: input, shape index: {}]
  %s2 = inlined_call_operand.vmem [shape: f32[16,8], index: 2, kind: input, shape index: {}]
  %s3 = inlined_call_operand.vmem [shape: f32[16,1], index: 3, kind: input, shape index: {}]
  %s4 = inlined_call_operand.vmem [shape: f32[16,9], index: 4, kind: input, shape index: {}]
  %s5 = inlined_call_operand.vmem [shape: f32[16,9], index: 5, kind: input, shape index: {}]
  %s6 = inlined_call_operand.vmem [shape: f32[8,256], index: 6, kind: input, shape index: {}]
  %s7 = inlined_call_operand.<no memory space> [shape: f32[1], index: 7, kind: input, shape index: {}]
  %s8 = inlined_call_operand.vmem [shape: f32[16,512], index: 8, kind: output, shape index: {}]
  %s9 = sld [smem:[#allocation0]]
  $region107: #{sfg_msa_pallas.1} parent=0
    _
  %s11 = ssub.s32 1, %s9
  %s12 = scalar_select 0, %s11, %s9
  %13 = sst [smem:[#allocation2]] %s7
  $region1: #{sfg_msa_pallas.1} parent=0
    #allocation3 [shape = 'u8[32768]{0}', space=vmem, size = 0x8000, scoped, tag = 'input window, operand 0']
    #allocation4 [shape = 'u8[32768]{0}', space=vmem, size = 0x8000, scoped, tag = 'output window, operand 0']
    loop: start=0, step=1, limit=4
    $region2: #{sfg_msa_pallas.1} parent=1 // loop_pre_header
      _
    $region3: #{sfg_msa_pallas.1} parent=1 // loop_header
      %s15 = sphi 0, %s19
      %p16 = scmp.ge.s32.totalorder %s15, 4
      %s25 = sphi 0, %s27
      %s28 = sphi 0, %s25
      %s29 = sphi 0, %s28
      %s45 = sphi 0, %s29
      %s49 = sphi 0, %s49
      %s51 = sphi 0, %s49
      %s52 = sphi 0, %s51
      %s66 = sphi 0, %s52
      %s70 = sphi 0, %s70
      %s72 = sphi 0, %s70
      %s73 = sphi 0, %s72
      %s87 = sphi 0, %s73
      %s91 = sphi 0, %s91
      %s93 = sphi 0, %s91
      %s94 = sphi 0, %s93
      %s108 = sphi 0, %s94
      %s112 = sphi 0, %s112
      %s114 = sphi 0, %s112
      %s115 = sphi 0, %s114
      %s129 = sphi 0, %s115
      %s133 = sphi 0, %s133
      %s135 = sphi 0, %s133
      %s136 = sphi 0, %s135
      %s150 = sphi 0, %s136
      %s154 = sphi 0, %s154
      %s156 = sphi 0, %s154
      %s157 = sphi 0, %s156
      %s171 = sphi 0, %s157
      %s175 = sphi 0, %s175
      %s177 = sphi 0, %s175
      %s178 = sphi 0, %s177
      %s192 = sphi 0, %s178
      %s198 = sphi 0, %s200
      %s201 = sphi 0, %s198
      %s202 = sphi 0, %s201
      %s218 = sphi 0, %s202
    $region4: #{sfg_msa_pallas.1} parent=1 // loop_header_branch
      %18 = sbr.rel (%p16) target = $region8
    $region5: #{sfg_msa_pallas.1} parent=1 // loop_body
      %s20 = ssub.s32 %s15, 1
      %s21 = ssub.s32 %s15, 2
      %s22 = sadd.s32 %s15, 1
      %s23 = ssub.s32 %s15, %s22
      %p24 = scmp.eq.s32.totalorder %s23, 0
      %s26 = sadd.s32 %s25, 1
      %s27 = scalar_select %p24, %s25, %s26
      %p30 = pneg %p24
      %p31 = scmp.eq.s32.totalorder %s15, 1
      %p32 = por %p30, %p31
      %p33 = scmp.ne.s32.totalorder %s25, %s28
      %p34 = scmp.eq.s32.totalorder %s15, 0
      %p35 = por %p33, %p34
      %p36 = scmp.ne.s32.totalorder %s25, %s28
      %p37 = scmp.eq.s32.totalorder %s20, 1
      %p38 = por %p36, %p37
      %p39 = scmp.ne.s32.totalorder %s28, %s29
      %p40 = scmp.eq.s32.totalorder %s20, 0
      %p41 = por %p39, %p40
      %p42 = scmp.ne.s32.totalorder %s28, %s29
      %p43 = scmp.eq.s32.totalorder %s21, 1
      %p44 = por %p42, %p43
      %p46 = scmp.ne.s32.totalorder %s29, %s45
      %p47 = scmp.eq.s32.totalorder %s21, 0
      %p48 = por %p46, %p47
      %s50 = sadd.s32 %s49, 1
      %p53 = scmp.eq.s32.totalorder %s15, 1
      %p54 = scmp.ne.s32.totalorder %s49, %s51
      %p55 = scmp.eq.s32.totalorder %s15, 0
      %p56 = por %p54, %p55
      %p57 = scmp.ne.s32.totalorder %s49, %s51
      %p58 = scmp.eq.s32.totalorder %s20, 1
      %p59 = por %p57, %p58
      %p60 = scmp.ne.s32.totalorder %s51, %s52
      %p61 = scmp.eq.s32.totalorder %s20, 0
      %p62 = por %p60, %p61
      %p63 = scmp.ne.s32.totalorder %s51, %s52
      %p64 = scmp.eq.s32.totalorder %s21, 1
      %p65 = por %p63, %p64
      %p67 = scmp.ne.s32.totalorder %s52, %s66
      %p68 = scmp.eq.s32.totalorder %s21, 0
      %p69 = por %p67, %p68
      %s71 = sadd.s32 %s70, 1
      %p74 = scmp.eq.s32.totalorder %s15, 1
      %p75 = scmp.ne.s32.totalorder %s70, %s72
      %p76 = scmp.eq.s32.totalorder %s15, 0
      %p77 = por %p75, %p76
      %p78 = scmp.ne.s32.totalorder %s70, %s72
      %p79 = scmp.eq.s32.totalorder %s20, 1
      %p80 = por %p78, %p79
      %p81 = scmp.ne.s32.totalorder %s72, %s73
      %p82 = scmp.eq.s32.totalorder %s20, 0
      %p83 = por %p81, %p82
      %p84 = scmp.ne.s32.totalorder %s72, %s73
      %p85 = scmp.eq.s32.totalorder %s21, 1
      %p86 = por %p84, %p85
      %p88 = scmp.ne.s32.totalorder %s73, %s87
      %p89 = scmp.eq.s32.totalorder %s21, 0
      %p90 = por %p88, %p89
      %s92 = sadd.s32 %s91, 1
      %p95 = scmp.eq.s32.totalorder %s15, 1
      %p96 = scmp.ne.s32.totalorder %s91, %s93
      %p97 = scmp.eq.s32.totalorder %s15, 0
      %p98 = por %p96, %p97
      %p99 = scmp.ne.s32.totalorder %s91, %s93
      %p100 = scmp.eq.s32.totalorder %s20, 1
      %p101 = por %p99, %p100
      %p102 = scmp.ne.s32.totalorder %s93, %s94
      %p103 = scmp.eq.s32.totalorder %s20, 0
      %p104 = por %p102, %p103
      %p105 = scmp.ne.s32.totalorder %s93, %s94
      %p106 = scmp.eq.s32.totalorder %s21, 1
      %p107 = por %p105, %p106
      %p109 = scmp.ne.s32.totalorder %s94, %s108
      %p110 = scmp.eq.s32.totalorder %s21, 0
      %p111 = por %p109, %p110
      %s113 = sadd.s32 %s112, 1
      %p116 = scmp.eq.s32.totalorder %s15, 1
      %p117 = scmp.ne.s32.totalorder %s112, %s114
      %p118 = scmp.eq.s32.totalorder %s15, 0
      %p119 = por %p117, %p118
      %p120 = scmp.ne.s32.totalorder %s112, %s114
      %p121 = scmp.eq.s32.totalorder %s20, 1
      %p122 = por %p120, %p121
      %p123 = scmp.ne.s32.totalorder %s114, %s115
      %p124 = scmp.eq.s32.totalorder %s20, 0
      %p125 = por %p123, %p124
      %p126 = scmp.ne.s32.totalorder %s114, %s115
      %p127 = scmp.eq.s32.totalorder %s21, 1
      %p128 = por %p126, %p127
      %p130 = scmp.ne.s32.totalorder %s115, %s129
      %p131 = scmp.eq.s32.totalorder %s21, 0
      %p132 = por %p130, %p131
      %s134 = sadd.s32 %s133, 1
      %p137 = scmp.eq.s32.totalorder %s15, 1
      %p138 = scmp.ne.s32.totalorder %s133, %s135
      %p139 = scmp.eq.s32.totalorder %s15, 0
      %p140 = por %p138, %p139
      %p141 = scmp.ne.s32.totalorder %s133, %s135
      %p142 = scmp.eq.s32.totalorder %s20, 1
      %p143 = por %p141, %p142
      %p144 = scmp.ne.s32.totalorder %s135, %s136
      %p145 = scmp.eq.s32.totalorder %s20, 0
      %p146 = por %p144, %p145
      %p147 = scmp.ne.s32.totalorder %s135, %s136
      %p148 = scmp.eq.s32.totalorder %s21, 1
      %p149 = por %p147, %p148
      %p151 = scmp.ne.s32.totalorder %s136, %s150
      %p152 = scmp.eq.s32.totalorder %s21, 0
      %p153 = por %p151, %p152
      %s155 = sadd.s32 %s154, 1
      %p158 = scmp.eq.s32.totalorder %s15, 1
      %p159 = scmp.ne.s32.totalorder %s154, %s156
      %p160 = scmp.eq.s32.totalorder %s15, 0
      %p161 = por %p159, %p160
      %p162 = scmp.ne.s32.totalorder %s154, %s156
      %p163 = scmp.eq.s32.totalorder %s20, 1
      %p164 = por %p162, %p163
      %p165 = scmp.ne.s32.totalorder %s156, %s157
      %p166 = scmp.eq.s32.totalorder %s20, 0
      %p167 = por %p165, %p166
      %p168 = scmp.ne.s32.totalorder %s156, %s157
      %p169 = scmp.eq.s32.totalorder %s21, 1
      %p170 = por %p168, %p169
      %p172 = scmp.ne.s32.totalorder %s157, %s171
      %p173 = scmp.eq.s32.totalorder %s21, 0
      %p174 = por %p172, %p173
      %s176 = sadd.s32 %s175, 1
      %p179 = scmp.eq.s32.totalorder %s15, 1
      %p180 = scmp.ne.s32.totalorder %s175, %s177
      %p181 = scmp.eq.s32.totalorder %s15, 0
      %p182 = por %p180, %p181
      %p183 = scmp.ne.s32.totalorder %s175, %s177
      %p184 = scmp.eq.s32.totalorder %s20, 1
      %p185 = por %p183, %p184
      %p186 = scmp.ne.s32.totalorder %s177, %s178
      %p187 = scmp.eq.s32.totalorder %s20, 0
      %p188 = por %p186, %p187
      %p189 = scmp.ne.s32.totalorder %s177, %s178
      %p190 = scmp.eq.s32.totalorder %s21, 1
      %p191 = por %p189, %p190
      %p193 = scmp.ne.s32.totalorder %s178, %s192
      %p194 = scmp.eq.s32.totalorder %s21, 0
      %p195 = por %p193, %p194
      %s196 = ssub.s32 %s15, %s22
      %p197 = scmp.eq.s32.totalorder %s196, 0
      %s199 = sadd.s32 %s198, 1
      %s200 = scalar_select %p197, %s198, %s199
      %p203 = pneg %p197
      %p204 = scmp.eq.s32.totalorder %s15, 1
      %p205 = por %p203, %p204
      %p206 = scmp.ne.s32.totalorder %s198, %s201
      %p207 = scmp.eq.s32.totalorder %s15, 0
      %p208 = por %p206, %p207
      %p209 = scmp.ne.s32.totalorder %s198, %s201
      %p210 = scmp.eq.s32.totalorder %s20, 1
      %p211 = por %p209, %p210
      %p212 = scmp.ne.s32.totalorder %s201, %s202
      %p213 = scmp.eq.s32.totalorder %s20, 0
      %p214 = por %p212, %p213
      %p215 = scmp.ne.s32.totalorder %s201, %s202
      %p216 = scmp.eq.s32.totalorder %s21, 1
      %p217 = por %p215, %p216
      %p219 = scmp.ne.s32.totalorder %s202, %s218
      %p220 = scmp.eq.s32.totalorder %s21, 0
      %p221 = por %p219, %p220
      %p222 = scmp.le.s32.totalorder 1, %s15
      %p223 = scmp.lt.s32.totalorder %s15, 3
      %p224 = pnand %p222, %p223
      %p225 = pneg %p224
      // Predicated region
      $region9: #{sfg_msa_pallas.1} parent=5 // pred_check
        _
      $region10: #{sfg_msa_pallas.1} parent=5 // pred_check_branch
        %227 = sbr.rel (%p224) target = $region12
      $region11: #{sfg_msa_pallas.1} parent=5 // pred_region
        %s228 = ssub.s32 %s15, 1
        // Predicated region
        $region13: #{sfg_msa_pallas.1} parent=11 // pred_check
          %p229 = pneg %p62
        $region14: #{sfg_msa_pallas.1} parent=11 // pred_check_branch
          %231 = sbr.rel (%p229) target = $region16
        $region15: #{sfg_msa_pallas.1} parent=11 // pred_region
          _
        $region16: #{sfg_msa_pallas.1} parent=11 // pred_fallthru
          _
        // Predicated region
        $region17: #{sfg_msa_pallas.1} parent=11 // pred_check
          %p232 = pneg %p83
        $region18: #{sfg_msa_pallas.1} parent=11 // pred_check_branch
          %234 = sbr.rel (%p232) target = $region20
        $region19: #{sfg_msa_pallas.1} parent=11 // pred_region
          _
        $region20: #{sfg_msa_pallas.1} parent=11 // pred_fallthru
          _
        // Predicated region
        $region21: #{sfg_msa_pallas.1} parent=11 // pred_check
          %p235 = pneg %p104
        $region22: #{sfg_msa_pallas.1} parent=11 // pred_check_branch
          %237 = sbr.rel (%p235) target = $region24
        $region23: #{sfg_msa_pallas.1} parent=11 // pred_region
          _
        $region24: #{sfg_msa_pallas.1} parent=11 // pred_fallthru
          _
        // Predicated region
        $region25: #{sfg_msa_pallas.1} parent=11 // pred_check
          %p238 = pneg %p125
        $region26: #{sfg_msa_pallas.1} parent=11 // pred_check_branch
          %240 = sbr.rel (%p238) target = $region28
        $region27: #{sfg_msa_pallas.1} parent=11 // pred_region
          _
        $region28: #{sfg_msa_pallas.1} parent=11 // pred_fallthru
          _
        // Predicated region
        $region29: #{sfg_msa_pallas.1} parent=11 // pred_check
          %p241 = pneg %p146
        $region30: #{sfg_msa_pallas.1} parent=11 // pred_check_branch
          %243 = sbr.rel (%p241) target = $region32
        $region31: #{sfg_msa_pallas.1} parent=11 // pred_region
          _
        $region32: #{sfg_msa_pallas.1} parent=11 // pred_fallthru
          _
        // Predicated region
        $region33: #{sfg_msa_pallas.1} parent=11 // pred_check
          %p244 = pneg %p167
        $region34: #{sfg_msa_pallas.1} parent=11 // pred_check_branch
          %246 = sbr.rel (%p244) target = $region36
        $region35: #{sfg_msa_pallas.1} parent=11 // pred_region
          _
        $region36: #{sfg_msa_pallas.1} parent=11 // pred_fallthru
          _
        // Predicated region
        $region37: #{sfg_msa_pallas.1} parent=11 // pred_check
          %p247 = pneg %p188
        $region38: #{sfg_msa_pallas.1} parent=11 // pred_check_branch
          %249 = sbr.rel (%p247) target = $region40
        $region39: #{sfg_msa_pallas.1} parent=11 // pred_region
          _
        $region40: #{sfg_msa_pallas.1} parent=11 // pred_fallthru
          _
      $region12: #{sfg_msa_pallas.1} parent=5 // pred_fallthru
        _
      %p250 = scmp.lt.s32.totalorder %s15, 2
      // Predicated region
      $region41: #{sfg_msa_pallas.1} parent=5 // pred_check
        %p251 = pneg %p250
      $region42: #{sfg_msa_pallas.1} parent=5 // pred_check_branch
        %253 = sbr.rel (%p251) target = $region44
      $region43: #{sfg_msa_pallas.1} parent=5 // pred_region
        // Predicated region
        $region45: #{sfg_msa_pallas.1} parent=43 // pred_check
          %p254 = pneg %p35
        $region46: #{sfg_msa_pallas.1} parent=43 // pred_check_branch
          %256 = sbr.rel (%p254) target = $region48
        $region47: #{sfg_msa_pallas.1} parent=43 // pred_region
          %s257 = sand.u32 %s25, 1
          %s258 = sand.u32 %s25, 1
          %s259 = smul.addr %s258, 32
          %s260 = scalar_lea.vmem [#allocation3], %s259
          %s261 = smul.u32 2, %s15
          %s262 = smul.addr %s261, 8
          %s263 = scalar_lea.vmem %s0, %s262
          // Predicated region
          $region49: #{sfg_msa_pallas.1} parent=47 // pred_check
            _
          $region50: #{sfg_msa_pallas.1} parent=47 // pred_check_branch
            %265 = sbr.rel (0) target = $region52
          $region51: #{sfg_msa_pallas.1} parent=47 // pred_region
            // Predicated region
            $region53: #{sfg_msa_pallas.1} parent=51 // pred_check
              _
            $region54: #{sfg_msa_pallas.1} parent=51 // pred_check_branch
              %267 = sbr.rel (0) target = $region56
            $region55: #{sfg_msa_pallas.1} parent=51 // pred_region
              loop: start=0, step=1, limit=1
              $region57: #{sfg_msa_pallas.1} parent=55 // loop_pre_header
                _
              $region58: #{sfg_msa_pallas.1} parent=55 // loop_header
                %s269 = sphi 0, %s273
                %p270 = scmp.ge.s32.totalorder %s269, 1
                %s274 = sphi %s263, %s263
                %s275 = sphi %s260, %s260
              $region59: #{sfg_msa_pallas.1} parent=55 // loop_header_branch
                %272 = sbr.rel (%p270) target = $region63
              $region60: #{sfg_msa_pallas.1} parent=55 // loop_body
                %v276 = vld [vmem:[%s274] sm:$0xff]
                %277 = vst [vmem:[%s275] sm:$0xff] %v276
                %v278 = vld [vmem:[%s274 + $0x8] sm:$0xff]
                %279 = vst [vmem:[%s275 + $0x8] sm:$0xff] %v278
                %v280 = vld [vmem:[%s274 + $0x20] sm:$0xff]
                %281 = vst [vmem:[%s275 + $0x10] sm:$0xff] %v280
                %v282 = vld [vmem:[%s274 + $0x28] sm:$0xff]
                %283 = vst [vmem:[%s275 + $0x18] sm:$0xff] %v282
              $region61: #{sfg_msa_pallas.1} parent=55 // loop_footer
                %s273 = sadd.s32 1, %s269
              $region62: #{sfg_msa_pallas.1} parent=55 // loop_footer_branch
                %268 = sbr.rel target = $region58
              $region63: #{sfg_msa_pallas.1} parent=55 // loop_exit
                _
            $region56: #{sfg_msa_pallas.1} parent=51 // pred_fallthru
              _
            // Predicated region
            $region64: #{sfg_msa_pallas.1} parent=51 // pred_check
              _
            $region65: #{sfg_msa_pallas.1} parent=51 // pred_check_branch
              %285 = sbr.rel target = $region67
            $region66: #{sfg_msa_pallas.1} parent=51 // pred_region
              _
            $region67: #{sfg_msa_pallas.1} parent=51 // pred_fallthru
              _
          $region52: #{sfg_msa_pallas.1} parent=47 // pred_fallthru
            _
          %286 = vnop
        $region48: #{sfg_msa_pallas.1} parent=43 // pred_fallthru
          _
      $region44: #{sfg_msa_pallas.1} parent=5 // pred_fallthru
        _
      %p287 = scmp.le.s32.totalorder 1, %s15
      %p288 = scmp.lt.s32.totalorder %s15, 3
      %p289 = pnand %p287, %p288
      %p290 = pneg %p289
      // Predicated region
      $region68: #{sfg_msa_pallas.1} parent=5 // pred_check
        _
      $region69: #{sfg_msa_pallas.1} parent=5 // pred_check_branch
        %292 = sbr.rel (%p289) target = $region71
      $region70: #{sfg_msa_pallas.1} parent=5 // pred_region
        %s293 = ssub.s32 %s15, 1
        %s294 = sand.u32 %s28, 1
        %s295 = sand.u32 %s28, 1
        %s296 = smul.addr %s295, 32
        %s297 = scalar_lea.vmem [#allocation3], %s296
        // Predicated region
        $region72: #{sfg_msa_pallas.1} parent=70 // pred_check
          %p298 = pneg %p41
        $region73: #{sfg_msa_pallas.1} parent=70 // pred_check_branch
          %300 = sbr.rel (%p298) target = $region75
        $region74: #{sfg_msa_pallas.1} parent=70 // pred_region
          _
        $region75: #{sfg_msa_pallas.1} parent=70 // pred_fallthru
          _
        %s301 = sand.u32 %s28, 1
        %s302 = sand.u32 %s28, 1
        %s303 = smul.addr %s302, 32
        %s304 = scalar_lea.vmem [#allocation3], %s303
        %p305 = pneg %p41
        %p306 = pneg %p38
        %p307 = pneg %p62
        %p308 = pneg %p59
        %p309 = pneg %p83
        %p310 = pneg %p80
        %p311 = pneg %p104
        %p312 = pneg %p101
        %p313 = pneg %p125
        %p314 = pneg %p122
        %p315 = pneg %p146
        %p316 = pneg %p143
        %p317 = pneg %p167
        %p318 = pneg %p164
        %p319 = pneg %p188
        %p320 = pneg %p185
        %p321 = pneg %p214
        %p322 = pneg %p211
        %s323 = sand.u32 %s201, 1
        %s324 = sand.u32 %s201, 1
        %s325 = smul.addr %s324, 32
        %s326 = scalar_lea.vmem [#allocation4], %s325
        %s327 = smul.u32 2, %s20
        %s328 = smul.u32 2, %s20
        %v329 = vld [vmem:[%s297] sm:$0xff]
        %v330 = vld [vmem:[%s297 + $0x8] sm:$0xff]
        %v331 = vld [vmem:[%s297 + $0x10] sm:$0xff]
        %v332 = vld [vmem:[%s297 + $0x18] sm:$0xff]
        %v333 = vld [vmem:[%s1] sm:$0xff]
        %v334 = vld [vmem:[%s1 + $0x8] sm:$0xff]
        %v335 = vld [vmem:[%s1 + $0x10] sm:$0xff]
        %v336 = vld [vmem:[%s1 + $0x18] sm:$0xff]
        %v337 = vld [vmem:[%s1 + $0x20] sm:$0xff]
        %vm338 = vcmask 130048
        %v340 = vsel %vm338, %v333, 0
        %v343 = vsel %vm338, %v334, 0
        %v346 = vsel %vm338, %v335, 0
        %v349 = vsel %vm338, %v336, 0
        %v352 = vsel %vm338, %v337, 0
        %354 = vmatprep.subr.mxu0 0.0
        %355 = vmatpush1.msra.mxu0 0.0
        %356 = vmatprep.subr.mxu0 0.0
        %357 = vmatpush1.msra.mxu0 0.0
        %358 = vmatprep.subr.mxu0 0.0
        %359 = vmatpush1.msra.mxu0 0.0
        %360 = vmatprep.subr.mxu0 0.0
        %361 = vmatpush1.msra.mxu0 0.0
        %362 = vmatprep.subr.mxu0 0.0
        %363 = vmatpush1.msra.mxu0 0.0
        %364 = vmatprep.subr.mxu0 0.0
        %365 = vmatpush1.msra.mxu0 0.0
        %366 = vmatprep.subr.mxu0 0.0
        %367 = vmatpush1.msra.mxu0 0.0
        %368 = vmatprep.subr.mxu0 0.0
        %369 = vmatpush1.msra.mxu0 0.0
        %370 = vmatprep.subr.mxu0 0.0
        %371 = vmatpush1.msra.mxu0 0.0
        %372 = vmatprep.subr.mxu0 0.0
        %373 = vmatpush1.msra.mxu0 0.0
        %374 = vmatprep.subr.mxu0 0.0
        %375 = vmatpush1.msra.mxu0 0.0
        %376 = vmatprep.subr.mxu0 0.0
        %377 = vmatpush1.msra.mxu0 0.0
        %378 = vmatprep.subr.mxu0 0.0
        %379 = vmatpush1.msra.mxu0 0.0
        %380 = vmatprep.subr.mxu0 0.0
        %381 = vmatpush1.msra.mxu0 0.0
        %382 = vmatprep.subr.mxu0 %v332
        %383 = vmatpush1.msra.mxu0 %v331
        %384 = vmatprep.subr.mxu0 %v330
        %385 = vmatpush1.msra.mxu0 %v329
        %386 = vmatprep.subr.mxu0 0.0
        %387 = vmatpush2.msra.mxu0 0.0
        %388 = vmatprep.subr.mxu0 0.0
        %389 = vmatpush2.msra.mxu0 0.0
        %390 = vmatprep.subr.mxu0 0.0
        %391 = vmatpush2.msra.mxu0 0.0
        %392 = vmatprep.subr.mxu0 0.0
        %393 = vmatpush2.msra.mxu0 0.0
        %394 = vmatprep.subr.mxu0 0.0
        %395 = vmatpush2.msra.mxu0 0.0
        %396 = vmatprep.subr.mxu0 0.0
        %397 = vmatpush2.msra.mxu0 0.0
        %398 = vmatprep.subr.mxu0 0.0
        %399 = vmatpush2.msra.mxu0 0.0
        %400 = vmatprep.subr.mxu0 0.0
        %401 = vmatpush2.msra.mxu0 0.0
        %402 = vmatprep.subr.mxu0 0.0
        %403 = vmatpush2.msra.mxu0 0.0
        %404 = vmatprep.subr.mxu0 0.0
        %405 = vmatpush2.msra.mxu0 0.0
        %406 = vmatprep.subr.mxu0 0.0
        %407 = vmatpush2.msra.mxu0 0.0
        %408 = vmatprep.subr.mxu0 0.0
        %409 = vmatpush2.msra.mxu0 0.0
        %410 = vmatprep.subr.mxu0 0.0
        %411 = vmatpush2.msra.mxu0 0.0
        %412 = vmatprep.subr.mxu0 0.0
        %413 = vmatpush2.msra.mxu0 0.0
        %414 = vmatprep.subr.mxu0 0.0
        %415 = vmatpush2.msra.mxu0 0.0
        %416 = vmatprep.subr.mxu0 0.0
        %417 = vmatpush2.msra.mxu0 0.0
        %418 = vmatprep.mubr.f32.mxu0 0.0
        %419 = vmatmul.mubr.f32.gmra.mxu0 %v340
        %v420 = vpop.f32.mrf.mxu0
        %v421 = vadd.f32 0.0, %v420
        %v422 = vpop.f32.mrf.mxu0
        %v423 = vadd.f32 0.0, %v422
        %424 = vmatprep.mubr.f32.mxu0 0.0
        %425 = vmatmul.mubr.f32.gmra.mxu0 %v343
        %v426 = vpop.f32.mrf.mxu0
        %v427 = vadd.f32 0.0, %v426
        %v428 = vpop.f32.mrf.mxu0
        %v429 = vadd.f32 0.0, %v428
        %430 = vmatprep.mubr.f32.mxu0 0.0
        %431 = vmatmul.mubr.f32.gmra.mxu0 %v346
        %v432 = vpop.f32.mrf.mxu0
        %v433 = vadd.f32 0.0, %v432
        %v434 = vpop.f32.mrf.mxu0
        %v435 = vadd.f32 0.0, %v434
        %436 = vmatprep.mubr.f32.mxu0 0.0
        %437 = vmatmul.mubr.f32.gmra.mxu0 %v349
        %v438 = vpop.f32.mrf.mxu0
        %v439 = vadd.f32 0.0, %v438
        %v440 = vpop.f32.mrf.mxu0
        %v441 = vadd.f32 0.0, %v440
        %442 = vmatprep.mubr.f32.mxu0 0.0
        %443 = vmatmul.mubr.f32.gmra.mxu0 %v352
        %v444 = vpop.f32.mrf.mxu0
        %v445 = vadd.f32 0.0, %v444
        %v446 = vpop.f32.mrf.mxu0
        %v447 = vadd.f32 0.0, %v446
        %448 = vdwg.mxu0
        %s449 = sld [smem:[#allocation2]]
        %v450 = vmul.f32 %v421, %v421
        %v451 = vmul.f32 %v423, %v423
        %v452 = vadd.f32 %v450, %v451
        %453 = vadd.xlane.f32.xlu0 %v452
        %v454 = vpop.xlane.xlu0 %453
        %v455 = vmax.f32 %v454, 1e-24
        %v456 = vrsqrt.pop %v455
        %v457 = vmul.f32 %v421, %v456
        %v458 = vmul.f32 %v423, %v456
        %v459 = vmul.f32 %v427, %v427
        %v460 = vmul.f32 %v429, %v429
        %v461 = vadd.f32 %v459, %v460
        %462 = vadd.xlane.f32.xlu0 %v461
        %v463 = vpop.xlane.xlu0 %462
        %v464 = vmax.f32 %v463, 1e-24
        %v465 = vrsqrt.pop %v464
        %v466 = vmul.f32 %v427, %v465
        %v467 = vmul.f32 %v429, %v465
        %468 = vmatprep.subr.mxu0 0.0
        %469 = vmatpush1.xpose.msra.mxu0 0.0
        %470 = vmatprep.subr.mxu0 0.0
        %471 = vmatpush1.xpose.msra.mxu0 0.0
        %472 = vmatprep.subr.mxu0 0.0
        %473 = vmatpush1.xpose.msra.mxu0 0.0
        %474 = vmatprep.subr.mxu0 0.0
        %475 = vmatpush1.xpose.msra.mxu0 0.0
        %476 = vmatprep.subr.mxu0 0.0
        %477 = vmatpush1.xpose.msra.mxu0 0.0
        %478 = vmatprep.subr.mxu0 0.0
        %479 = vmatpush1.xpose.msra.mxu0 0.0
        %480 = vmatprep.subr.mxu0 0.0
        %481 = vmatpush1.xpose.msra.mxu0 0.0
        %482 = vmatprep.subr.mxu0 0.0
        %483 = vmatpush1.xpose.msra.mxu0 0.0
        %484 = vmatprep.subr.mxu0 0.0
        %485 = vmatpush1.xpose.msra.mxu0 0.0
        %486 = vmatprep.subr.mxu0 0.0
        %487 = vmatpush1.xpose.msra.mxu0 0.0
        %488 = vmatprep.subr.mxu0 0.0
        %489 = vmatpush1.xpose.msra.mxu0 0.0
        %490 = vmatprep.subr.mxu0 0.0
        %491 = vmatpush1.xpose.msra.mxu0 0.0
        %492 = vmatprep.subr.mxu0 0.0
        %493 = vmatpush1.xpose.msra.mxu0 0.0
        %494 = vmatprep.subr.mxu0 0.0
        %495 = vmatpush1.xpose.msra.mxu0 0.0
        %496 = vmatprep.subr.mxu0 0.0
        %497 = vmatpush1.xpose.msra.mxu0 0.0
        %498 = vmatprep.subr.mxu0 %v458
        %499 = vmatpush1.xpose.msra.mxu0 %v457
        %500 = vmatprep.subr.mxu0 0.0
        %501 = vmatpush2.xpose.msra.mxu0 0.0
        %502 = vmatprep.subr.mxu0 0.0
        %503 = vmatpush2.xpose.msra.mxu0 0.0
        %504 = vmatprep.subr.mxu0 0.0
        %505 = vmatpush2.xpose.msra.mxu0 0.0
        %506 = vmatprep.subr.mxu0 0.0
        %507 = vmatpush2.xpose.msra.mxu0 0.0
        %508 = vmatprep.subr.mxu0 0.0
        %509 = vmatpush2.xpose.msra.mxu0 0.0
        %510 = vmatprep.subr.mxu0 0.0
        %511 = vmatpush2.xpose.msra.mxu0 0.0
        %512 = vmatprep.subr.mxu0 0.0
        %513 = vmatpush2.xpose.msra.mxu0 0.0
        %514 = vmatprep.subr.mxu0 0.0
        %515 = vmatpush2.xpose.msra.mxu0 0.0
        %516 = vmatprep.subr.mxu0 0.0
        %517 = vmatpush2.xpose.msra.mxu0 0.0
        %518 = vmatprep.subr.mxu0 0.0
        %519 = vmatpush2.xpose.msra.mxu0 0.0
        %520 = vmatprep.subr.mxu0 0.0
        %521 = vmatpush2.xpose.msra.mxu0 0.0
        %522 = vmatprep.subr.mxu0 0.0
        %523 = vmatpush2.xpose.msra.mxu0 0.0
        %524 = vmatprep.subr.mxu0 0.0
        %525 = vmatpush2.xpose.msra.mxu0 0.0
        %526 = vmatprep.subr.mxu0 0.0
        %527 = vmatpush2.xpose.msra.mxu0 0.0
        %528 = vmatprep.subr.mxu0 0.0
        %529 = vmatpush2.xpose.msra.mxu0 0.0
        %530 = vmatprep.subr.mxu0 0.0
        %531 = vmatpush2.xpose.msra.mxu0 0.0
        %532 = vmatprep.mubr.f32.mxu0 %v467
        %533 = vmatmul.mubr.f32.gmra.mxu0 %v466
        %v534 = vpop.f32.mrf.mxu0
        %v535 = vadd.f32 0.0, %v534
        %v536 = vpop.f32.mrf.mxu0
        %537 = vdwg.mxu0
        %v538 = vstv %s449
        %v539 = vmul.f32 %v535, %v538
        %vm540 = vcmask 64512
        %v541 = vsel %vm540, %v539, -inf
        %542 = vmax.xlane.f32.xlu0 %v541
        %v543 = vpop.xlane.xlu0 %542
        %v544 = vsub.f32 %v539, %v543
        %v545 = vmul.f32 %v544, 1.442695
        %v546 = vpow.pop %v545
        %v547 = vsel %vm540, %v546, 0.0
        %548 = vadd.xlane.f32.xlu0 %v547
        %v549 = vpop.xlane.xlu0 %548
        %v550 = vrcp.pop %v549
        %v551 = vmul.f32 %v546, %v550
        %v553 = vsel %vm540, %v551, 0
        %555 = vmatprep.subr.mxu0 0.0
        %556 = vmatpush1.msra.mxu0 0.0
        %557 = vmatprep.subr.mxu0 0.0
        %558 = vmatpush1.msra.mxu0 0.0
        %559 = vmatprep.subr.mxu0 0.0
        %560 = vmatpush1.msra.mxu0 0.0
        %561 = vmatprep.subr.mxu0 0.0
        %562 = vmatpush1.msra.mxu0 0.0
        %563 = vmatprep.subr.mxu0 0.0
        %564 = vmatpush1.msra.mxu0 0.0
        %565 = vmatprep.subr.mxu0 0.0
        %566 = vmatpush1.msra.mxu0 0.0
        %567 = vmatprep.subr.mxu0 0.0
        %568 = vmatpush1.msra.mxu0 0.0
        %569 = vmatprep.subr.mxu0 0.0
        %570 = vmatpush1.msra.mxu0 0.0
        %571 = vmatprep.subr.mxu0 0.0
        %572 = vmatpush1.msra.mxu0 0.0
        %573 = vmatprep.subr.mxu0 0.0
        %574 = vmatpush1.msra.mxu0 0.0
        %575 = vmatprep.subr.mxu0 0.0
        %576 = vmatpush1.msra.mxu0 0.0
        %577 = vmatprep.subr.mxu0 0.0
        %578 = vmatpush1.msra.mxu0 0.0
        %579 = vmatprep.subr.mxu0 0.0
        %580 = vmatpush1.msra.mxu0 0.0
        %581 = vmatprep.subr.mxu0 0.0
        %582 = vmatpush1.msra.mxu0 0.0
        %583 = vmatprep.subr.mxu0 0.0
        %584 = vmatpush1.msra.mxu0 0.0
        %585 = vmatprep.subr.mxu0 %v435
        %586 = vmatpush1.msra.mxu0 %v433
        %587 = vmatprep.subr.mxu0 0.0
        %588 = vmatpush2.msra.mxu0 0.0
        %589 = vmatprep.subr.mxu0 0.0
        %590 = vmatpush2.msra.mxu0 0.0
        %591 = vmatprep.subr.mxu0 0.0
        %592 = vmatpush2.msra.mxu0 0.0
        %593 = vmatprep.subr.mxu0 0.0
        %594 = vmatpush2.msra.mxu0 0.0
        %595 = vmatprep.subr.mxu0 0.0
        %596 = vmatpush2.msra.mxu0 0.0
        %597 = vmatprep.subr.mxu0 0.0
        %598 = vmatpush2.msra.mxu0 0.0
        %599 = vmatprep.subr.mxu0 0.0
        %600 = vmatpush2.msra.mxu0 0.0
        %601 = vmatprep.subr.mxu0 0.0
        %602 = vmatpush2.msra.mxu0 0.0
        %603 = vmatprep.subr.mxu0 0.0
        %604 = vmatpush2.msra.mxu0 0.0
        %605 = vmatprep.subr.mxu0 0.0
        %606 = vmatpush2.msra.mxu0 0.0
        %607 = vmatprep.subr.mxu0 0.0
        %608 = vmatpush2.msra.mxu0 0.0
        %609 = vmatprep.subr.mxu0 0.0
        %610 = vmatpush2.msra.mxu0 0.0
        %611 = vmatprep.subr.mxu0 0.0
        %612 = vmatpush2.msra.mxu0 0.0
        %613 = vmatprep.subr.mxu0 0.0
        %614 = vmatpush2.msra.mxu0 0.0
        %615 = vmatprep.subr.mxu0 0.0
        %616 = vmatpush2.msra.mxu0 0.0
        %617 = vmatprep.subr.mxu0 0.0
        %618 = vmatpush2.msra.mxu0 0.0
        %619 = vmatprep.mubr.f32.mxu0 0.0
        %620 = vmatmul.mubr.f32.gmra.mxu0 %v553
        %v621 = vpop.f32.mrf.mxu0
        %v622 = vadd.f32 0.0, %v621
        %v623 = vpop.f32.mrf.mxu0
        %v624 = vadd.f32 0.0, %v623
        %625 = vdwg.mxu0
        %v626 = vld [vmem:[%s2] sm:$0xff]
        %v627 = vld [vmem:[%s2 + $0x8] sm:$0xff]
        %v628 = vld [vmem:[%s3] sm:$0xff]
        %v629 = vld [vmem:[%s3 + $0x8] sm:$0xff]
        %631 = vset.pattern.permute.xlu0 0
        %632 = vperm.xlu0 %631, %v628
        %v633 = vpop.permute.xlu0 %632
        %636 = vset.pattern.permute.xlu0 0
        %637 = vperm.xlu0 %636, %v629
        %v638 = vpop.permute.xlu0 %637
        %v641 = vsel %vm540, %v626, 0
        %v644 = vsel %vm540, %v627, 0
        %646 = vmatprep.subr.mxu0 0.0
        %647 = vmatpush1.msra.mxu0 0.0
        %648 = vmatprep.subr.mxu0 0.0
        %649 = vmatpush1.msra.mxu0 0.0
        %650 = vmatprep.subr.mxu0 0.0
        %651 = vmatpush1.msra.mxu0 0.0
        %652 = vmatprep.subr.mxu0 0.0
        %653 = vmatpush1.msra.mxu0 0.0
        %654 = vmatprep.subr.mxu0 0.0
        %655 = vmatpush1.msra.mxu0 0.0
        %656 = vmatprep.subr.mxu0 0.0
        %657 = vmatpush1.msra.mxu0 0.0
        %658 = vmatprep.subr.mxu0 0.0
        %659 = vmatpush1.msra.mxu0 0.0
        %660 = vmatprep.subr.mxu0 0.0
        %661 = vmatpush1.msra.mxu0 0.0
        %662 = vmatprep.subr.mxu0 0.0
        %663 = vmatpush1.msra.mxu0 0.0
        %664 = vmatprep.subr.mxu0 0.0
        %665 = vmatpush1.msra.mxu0 0.0
        %666 = vmatprep.subr.mxu0 0.0
        %667 = vmatpush1.msra.mxu0 0.0
        %668 = vmatprep.subr.mxu0 0.0
        %669 = vmatpush1.msra.mxu0 0.0
        %670 = vmatprep.subr.mxu0 0.0
        %671 = vmatpush1.msra.mxu0 0.0
        %672 = vmatprep.subr.mxu0 0.0
        %673 = vmatpush1.msra.mxu0 0.0
        %674 = vmatprep.subr.mxu0 0.0
        %675 = vmatpush1.msra.mxu0 0.0
        %676 = vmatprep.subr.mxu0 %v624
        %677 = vmatpush1.msra.mxu0 %v622
        %678 = vmatprep.subr.mxu0 0.0
        %679 = vmatpush2.msra.mxu0 0.0
        %680 = vmatprep.subr.mxu0 0.0
        %681 = vmatpush2.msra.mxu0 0.0
        %682 = vmatprep.subr.mxu0 0.0
        %683 = vmatpush2.msra.mxu0 0.0
        %684 = vmatprep.subr.mxu0 0.0
        %685 = vmatpush2.msra.mxu0 0.0
        %686 = vmatprep.subr.mxu0 0.0
        %687 = vmatpush2.msra.mxu0 0.0
        %688 = vmatprep.subr.mxu0 0.0
        %689 = vmatpush2.msra.mxu0 0.0
        %690 = vmatprep.subr.mxu0 0.0
        %691 = vmatpush2.msra.mxu0 0.0
        %692 = vmatprep.subr.mxu0 0.0
        %693 = vmatpush2.msra.mxu0 0.0
        %694 = vmatprep.subr.mxu0 0.0
        %695 = vmatpush2.msra.mxu0 0.0
        %696 = vmatprep.subr.mxu0 0.0
        %697 = vmatpush2.msra.mxu0 0.0
        %698 = vmatprep.subr.mxu0 0.0
        %699 = vmatpush2.msra.mxu0 0.0
        %700 = vmatprep.subr.mxu0 0.0
        %701 = vmatpush2.msra.mxu0 0.0
        %702 = vmatprep.subr.mxu0 0.0
        %703 = vmatpush2.msra.mxu0 0.0
        %704 = vmatprep.subr.mxu0 0.0
        %705 = vmatpush2.msra.mxu0 0.0
        %706 = vmatprep.subr.mxu0 0.0
        %707 = vmatpush2.msra.mxu0 0.0
        %708 = vmatprep.subr.mxu0 0.0
        %709 = vmatpush2.msra.mxu0 0.0
        %710 = vmatprep.mubr.f32.mxu0 0.0
        %711 = vmatmul.mubr.f32.gmra.mxu0 %v641
        %v712 = vpop.f32.mrf.mxu0
        %v713 = vadd.f32 %v633, %v712
        %v714 = vpop.f32.mrf.mxu0
        %v715 = vadd.f32 %v633, %v714
        %716 = vmatprep.mubr.f32.mxu0 0.0
        %717 = vmatmul.mubr.f32.gmra.mxu0 %v644
        %v718 = vpop.f32.mrf.mxu0
        %v719 = vadd.f32 %v638, %v718
        %v720 = vpop.f32.mrf.mxu0
        %v721 = vadd.f32 %v638, %v720
        %722 = vdwg.mxu0
        %v723 = vld [vmem:[%s6] sm:$0xff]
        %v724 = vld [vmem:[%s6 + $0x8] sm:$0xff]
        %v725 = vld [vmem:[%s4] sm:$0xff]
        %v726 = vld [vmem:[%s4 + $0x8] sm:$0xff]
        %728 = vset.pattern.permute.xlu0 4
        %729 = vperm.xlu0 %728, %v725
        %v730 = vpop.permute.xlu0 %729
        %733 = vset.pattern.permute.xlu0 4
        %734 = vperm.xlu0 %733, %v726
        %v735 = vpop.permute.xlu0 %734
        %v737 = vmul.f32 %v730, %v439
        %v738 = vmul.f32 %v730, %v441
        %v739 = vmul.f32 %v735, %v445
        %v740 = vmul.f32 %v735, %v447
        %741 = vrot.lane.b32.xlu0 %v439, 17
        %v742 = vpop.permute.xlu0 %741
        %743 = vrot.lane.b32.xlu0 %v445, 17
        %v744 = vpop.permute.xlu0 %743
        %745 = vrot.lane.b32.xlu0 %v441, 17
        %v746 = vpop.permute.xlu0 %745
        %747 = vrot.lane.b32.xlu0 %v447, 17
        %v748 = vpop.permute.xlu0 %747
        %v749 = vlaneseq
        %v750 = vand.u32 %v749, 127
        %vm751 = vcmp.lt.s32.totalorder %v750, 17
        %v752 = vsel %vm751, %v742, %v746
        %v753 = vsel %vm751, %v744, %v748
        %v754 = vsel %vm751, %v746, %v742
        %v755 = vsel %vm751, %v748, %v744
        %v756 = vlaneseq
        %v757 = vshrl.u32 %v756, 7
        %v758 = vsub.s32 0, %v757
        %v759 = vrot.slane %v723, %v758
        %v760 = vlaneseq
        %v761 = vshrl.u32 %v760, 7
        %v762 = vsub.s32 0, %v761
        %v763 = vrot.slane %v724, %v762
        %v764 = vmul.f32 %v754, %v759
        %v765 = vmul.f32 %v752, %v763
        %v766 = vmul.f32 %v755, %v759
        %v767 = vmul.f32 %v753, %v763
        %768 = vset.pattern.permute.xlu0 0
        %769 = vperm.xlu0 %768, %v725
        %v770 = vpop.permute.xlu0 %769
        %772 = vset.pattern.permute.xlu0 0
        %773 = vperm.xlu0 %772, %v726
        %v774 = vpop.permute.xlu0 %773
        %v776 = vmul.f32 %v770, %v764
        %v777 = vmul.f32 %v770, %v765
        %v778 = vmul.f32 %v774, %v766
        %v779 = vmul.f32 %v774, %v767
        %v780 = vadd.f32 %v737, %v776
        %v781 = vadd.f32 %v738, %v777
        %v782 = vadd.f32 %v739, %v778
        %v783 = vadd.f32 %v740, %v779
        %784 = vrot.lane.b32.xlu0 %v439, 16
        %v785 = vpop.permute.xlu0 %784
        %786 = vrot.lane.b32.xlu0 %v445, 16
        %v787 = vpop.permute.xlu0 %786
        %788 = vrot.lane.b32.xlu0 %v441, 16
        %v789 = vpop.permute.xlu0 %788
        %790 = vrot.lane.b32.xlu0 %v447, 16
        %v791 = vpop.permute.xlu0 %790
        %vm792 = vcmp.lt.s32.totalorder %v750, 16
        %v793 = vsel %vm792, %v785, %v789
        %v794 = vsel %vm792, %v787, %v791
        %v795 = vsel %vm792, %v789, %v785
        %v796 = vsel %vm792, %v791, %v787
        %v797 = vlaneseq
        %v798 = vshrl.u32 %v797, 7
        %v799 = vsub.s32 1, %v798
        %v800 = vrot.slane %v723, %v799
        %v801 = vlaneseq
        %v802 = vshrl.u32 %v801, 7
        %v803 = vsub.s32 1, %v802
        %v804 = vrot.slane %v724, %v803
        %v805 = vmul.f32 %v795, %v800
        %v806 = vmul.f32 %v793, %v804
        %v807 = vmul.f32 %v796, %v800
        %v808 = vmul.f32 %v794, %v804
        %809 = vset.pattern.permute.xlu0 1
        %810 = vperm.xlu0 %809, %v725
        %v811 = vpop.permute.xlu0 %810
        %813 = vset.pattern.permute.xlu0 1
        %814 = vperm.xlu0 %813, %v726
        %v815 = vpop.permute.xlu0 %814
        %v817 = vmul.f32 %v811, %v805
        %v818 = vmul.f32 %v811, %v806
        %v819 = vmul.f32 %v815, %v807
        %v820 = vmul.f32 %v815, %v808
        %v821 = vadd.f32 %v780, %v817
        %v822 = vadd.f32 %v781, %v818
        %v823 = vadd.f32 %v782, %v819
        %v824 = vadd.f32 %v783, %v820
        %825 = vrot.lane.b32.xlu0 %v439, 15
        %v826 = vpop.permute.xlu0 %825
        %827 = vrot.lane.b32.xlu0 %v445, 15
        %v828 = vpop.permute.xlu0 %827
        %829 = vrot.lane.b32.xlu0 %v441, 15
        %v830 = vpop.permute.xlu0 %829
        %831 = vrot.lane.b32.xlu0 %v447, 15
        %v832 = vpop.permute.xlu0 %831
        %vm833 = vcmp.lt.s32.totalorder %v750, 15
        %v834 = vsel %vm833, %v826, %v830
        %v835 = vsel %vm833, %v828, %v832
        %v836 = vsel %vm833, %v830, %v826
        %v837 = vsel %vm833, %v832, %v828
        %v838 = vlaneseq
        %v839 = vshrl.u32 %v838, 7
        %v840 = vsub.s32 2, %v839
        %v841 = vrot.slane %v723, %v840
        %v842 = vlaneseq
        %v843 = vshrl.u32 %v842, 7
        %v844 = vsub.s32 2, %v843
        %v845 = vrot.slane %v724, %v844
        %v846 = vmul.f32 %v836, %v841
        %v847 = vmul.f32 %v834, %v845
        %v848 = vmul.f32 %v837, %v841
        %v849 = vmul.f32 %v835, %v845
        %850 = vset.pattern.permute.xlu0 2
        %851 = vperm.xlu0 %850, %v725
        %v852 = vpop.permute.xlu0 %851
        %854 = vset.pattern.permute.xlu0 2
        %855 = vperm.xlu0 %854, %v726
        %v856 = vpop.permute.xlu0 %855
        %v858 = vmul.f32 %v852, %v846
        %v859 = vmul.f32 %v852, %v847
        %v860 = vmul.f32 %v856, %v848
        %v861 = vmul.f32 %v856, %v849
        %v862 = vadd.f32 %v821, %v858
        %v863 = vadd.f32 %v822, %v859
        %v864 = vadd.f32 %v823, %v860
        %v865 = vadd.f32 %v824, %v861
        %866 = vrot.lane.b32.xlu0 %v439, 1
        %v867 = vpop.permute.xlu0 %866
        %868 = vrot.lane.b32.xlu0 %v445, 1
        %v869 = vpop.permute.xlu0 %868
        %870 = vrot.lane.b32.xlu0 %v441, 1
        %v871 = vpop.permute.xlu0 %870
        %872 = vrot.lane.b32.xlu0 %v447, 1
        %v873 = vpop.permute.xlu0 %872
        %vm874 = vcmp.lt.s32.totalorder %v750, 1
        %v875 = vsel %vm874, %v867, %v871
        %v876 = vsel %vm874, %v869, %v873
        %v877 = vsel %vm874, %v871, %v867
        %v878 = vsel %vm874, %v873, %v869
        %v879 = vlaneseq
        %v880 = vshrl.u32 %v879, 7
        %v881 = vsub.s32 3, %v880
        %v882 = vrot.slane %v723, %v881
        %v883 = vlaneseq
        %v884 = vshrl.u32 %v883, 7
        %v885 = vsub.s32 3, %v884
        %v886 = vrot.slane %v724, %v885
        %v887 = vmul.f32 %v877, %v882
        %v888 = vmul.f32 %v875, %v886
        %v889 = vmul.f32 %v878, %v882
        %v890 = vmul.f32 %v876, %v886
        %891 = vset.pattern.permute.xlu0 3
        %892 = vperm.xlu0 %891, %v725
        %v893 = vpop.permute.xlu0 %892
        %895 = vset.pattern.permute.xlu0 3
        %896 = vperm.xlu0 %895, %v726
        %v897 = vpop.permute.xlu0 %896
        %v899 = vmul.f32 %v893, %v887
        %v900 = vmul.f32 %v893, %v888
        %v901 = vmul.f32 %v897, %v889
        %v902 = vmul.f32 %v897, %v890
        %v903 = vadd.f32 %v862, %v899
        %v904 = vadd.f32 %v863, %v900
        %v905 = vadd.f32 %v864, %v901
        %v906 = vadd.f32 %v865, %v902
        %907 = vrot.lane.b32.xlu0 %v439, 127
        %v908 = vpop.permute.xlu0 %907
        %909 = vrot.lane.b32.xlu0 %v445, 127
        %v910 = vpop.permute.xlu0 %909
        %911 = vrot.lane.b32.xlu0 %v441, 127
        %v912 = vpop.permute.xlu0 %911
        %913 = vrot.lane.b32.xlu0 %v447, 127
        %v914 = vpop.permute.xlu0 %913
        %vm915 = vcmp.lt.s32.totalorder %v750, 127
        %v916 = vsel %vm915, %v908, %v912
        %v917 = vsel %vm915, %v910, %v914
        %v918 = vsel %vm915, %v912, %v908
        %v919 = vsel %vm915, %v914, %v910
        %v920 = vlaneseq
        %v921 = vshrl.u32 %v920, 7
        %v922 = vsub.s32 4, %v921
        %v923 = vrot.slane %v723, %v922
        %v924 = vlaneseq
        %v925 = vshrl.u32 %v924, 7
        %v926 = vsub.s32 4, %v925
        %v927 = vrot.slane %v724, %v926
        %v928 = vmul.f32 %v916, %v923
        %v929 = vmul.f32 %v918, %v927
        %v930 = vmul.f32 %v917, %v923
        %v931 = vmul.f32 %v919, %v927
        %932 = vset.pattern.permute.xlu0 5
        %933 = vperm.xlu0 %932, %v725
        %v934 = vpop.permute.xlu0 %933
        %936 = vset.pattern.permute.xlu0 5
        %937 = vperm.xlu0 %936, %v726
        %v938 = vpop.permute.xlu0 %937
        %v940 = vmul.f32 %v934, %v928
        %v941 = vmul.f32 %v934, %v929
        %v942 = vmul.f32 %v938, %v930
        %v943 = vmul.f32 %v938, %v931
        %v944 = vadd.f32 %v903, %v940
        %v945 = vadd.f32 %v904, %v941
        %v946 = vadd.f32 %v905, %v942
        %v947 = vadd.f32 %v906, %v943
        %948 = vrot.lane.b32.xlu0 %v439, 113
        %v949 = vpop.permute.xlu0 %948
        %950 = vrot.lane.b32.xlu0 %v445, 113
        %v951 = vpop.permute.xlu0 %950
        %952 = vrot.lane.b32.xlu0 %v441, 113
        %v953 = vpop.permute.xlu0 %952
        %954 = vrot.lane.b32.xlu0 %v447, 113
        %v955 = vpop.permute.xlu0 %954
        %vm956 = vcmp.lt.s32.totalorder %v750, 113
        %v957 = vsel %vm956, %v949, %v953
        %v958 = vsel %vm956, %v951, %v955
        %v959 = vsel %vm956, %v953, %v949
        %v960 = vsel %vm956, %v955, %v951
        %v961 = vlaneseq
        %v962 = vshrl.u32 %v961, 7
        %v963 = vsub.s32 5, %v962
        %v964 = vrot.slane %v723, %v963
        %v965 = vlaneseq
        %v966 = vshrl.u32 %v965, 7
        %v967 = vsub.s32 5, %v966
        %v968 = vrot.slane %v724, %v967
        %v969 = vmul.f32 %v957, %v964
        %v970 = vmul.f32 %v959, %v968
        %v971 = vmul.f32 %v958, %v964
        %v972 = vmul.f32 %v960, %v968
        %973 = vset.pattern.permute.xlu0 6
        %974 = vperm.xlu0 %973, %v725
        %v975 = vpop.permute.xlu0 %974
        %977 = vset.pattern.permute.xlu0 6
        %978 = vperm.xlu0 %977, %v726
        %v979 = vpop.permute.xlu0 %978
        %v981 = vmul.f32 %v975, %v969
        %v982 = vmul.f32 %v975, %v970
        %v983 = vmul.f32 %v979, %v971
        %v984 = vmul.f32 %v979, %v972
        %v985 = vadd.f32 %v944, %v981
        %v986 = vadd.f32 %v945, %v982
        %v987 = vadd.f32 %v946, %v983
        %v988 = vadd.f32 %v947, %v984
        %989 = vrot.lane.b32.xlu0 %v439, 112
        %v990 = vpop.permute.xlu0 %989
        %991 = vrot.lane.b32.xlu0 %v445, 112
        %v992 = vpop.permute.xlu0 %991
        %993 = vrot.lane.b32.xlu0 %v441, 112
        %v994 = vpop.permute.xlu0 %993
        %995 = vrot.lane.b32.xlu0 %v447, 112
        %v996 = vpop.permute.xlu0 %995
        %vm997 = vcmp.lt.s32.totalorder %v750, 112
        %v998 = vsel %vm997, %v990, %v994
        %v999 = vsel %vm997, %v992, %v996
        %v1000 = vsel %vm997, %v994, %v990
        %v1001 = vsel %vm997, %v996, %v992
        %v1002 = vlaneseq
        %v1003 = vshrl.u32 %v1002, 7
        %v1004 = vsub.s32 6, %v1003
        %v1005 = vrot.slane %v723, %v1004
        %v1006 = vlaneseq
        %v1007 = vshrl.u32 %v1006, 7
        %v1008 = vsub.s32 6, %v1007
        %v1009 = vrot.slane %v724, %v1008
        %v1010 = vmul.f32 %v998, %v1005
        %v1011 = vmul.f32 %v1000, %v1009
        %v1012 = vmul.f32 %v999, %v1005
        %v1013 = vmul.f32 %v1001, %v1009
        %1014 = vset.pattern.permute.xlu0 7
        %1015 = vperm.xlu0 %1014, %v725
        %v1016 = vpop.permute.xlu0 %1015
        %1018 = vset.pattern.permute.xlu0 7
        %1019 = vperm.xlu0 %1018, %v726
        %v1020 = vpop.permute.xlu0 %1019
        %v1022 = vmul.f32 %v1016, %v1010
        %v1023 = vmul.f32 %v1016, %v1011
        %v1024 = vmul.f32 %v1020, %v1012
        %v1025 = vmul.f32 %v1020, %v1013
        %v1026 = vadd.f32 %v985, %v1022
        %v1027 = vadd.f32 %v986, %v1023
        %v1028 = vadd.f32 %v987, %v1024
        %v1029 = vadd.f32 %v988, %v1025
        %1030 = vrot.lane.b32.xlu0 %v439, 111
        %v1031 = vpop.permute.xlu0 %1030
        %1032 = vrot.lane.b32.xlu0 %v445, 111
        %v1033 = vpop.permute.xlu0 %1032
        %1034 = vrot.lane.b32.xlu0 %v441, 111
        %v1035 = vpop.permute.xlu0 %1034
        %1036 = vrot.lane.b32.xlu0 %v447, 111
        %v1037 = vpop.permute.xlu0 %1036
        %vm1038 = vcmp.lt.s32.totalorder %v750, 111
        %v1039 = vsel %vm1038, %v1031, %v1035
        %v1040 = vsel %vm1038, %v1033, %v1037
        %v1041 = vsel %vm1038, %v1035, %v1031
        %v1042 = vsel %vm1038, %v1037, %v1033
        %v1043 = vlaneseq
        %v1044 = vshrl.u32 %v1043, 7
        %v1045 = vsub.s32 7, %v1044
        %v1046 = vrot.slane %v723, %v1045
        %v1047 = vlaneseq
        %v1048 = vshrl.u32 %v1047, 7
        %v1049 = vsub.s32 7, %v1048
        %v1050 = vrot.slane %v724, %v1049
        %v1051 = vmul.f32 %v1039, %v1046
        %v1052 = vmul.f32 %v1041, %v1050
        %v1053 = vmul.f32 %v1040, %v1046
        %v1054 = vmul.f32 %v1042, %v1050
        %1055 = vset.pattern.permute.xlu0 8
        %1056 = vperm.xlu0 %1055, %v725
        %v1057 = vpop.permute.xlu0 %1056
        %1059 = vset.pattern.permute.xlu0 8
        %1060 = vperm.xlu0 %1059, %v726
        %v1061 = vpop.permute.xlu0 %1060
        %v1063 = vmul.f32 %v1057, %v1051
        %v1064 = vmul.f32 %v1057, %v1052
        %v1065 = vmul.f32 %v1061, %v1053
        %v1066 = vmul.f32 %v1061, %v1054
        %v1067 = vadd.f32 %v1026, %v1063
        %v1068 = vadd.f32 %v1027, %v1064
        %v1069 = vadd.f32 %v1028, %v1065
        %v1070 = vadd.f32 %v1029, %v1066
        %v1071 = vmul.f32 %v1067, 0.5
        %v1072 = vmul.f32 %v1068, 0.5
        %v1073 = vmul.f32 %v1069, 0.5
        %v1074 = vmul.f32 %v1070, 0.5
        %v1075 = vmul.f32 %v1067, %v1067
        %v1076 = vmul.f32 %v1068, %v1068
        %v1077 = vmul.f32 %v1069, %v1069
        %v1078 = vmul.f32 %v1070, %v1070
        %v1079 = vmul.f32 %v1075, %v1067
        %v1080 = vmul.f32 %v1076, %v1068
        %v1081 = vmul.f32 %v1077, %v1069
        %v1082 = vmul.f32 %v1078, %v1070
        %v1083 = vmul.f32 %v1079, 0.044715
        %v1084 = vmul.f32 %v1080, 0.044715
        %v1085 = vmul.f32 %v1081, 0.044715
        %v1086 = vmul.f32 %v1082, 0.044715
        %v1087 = vadd.f32 %v1067, %v1083
        %v1088 = vadd.f32 %v1068, %v1084
        %v1089 = vadd.f32 %v1069, %v1085
        %v1090 = vadd.f32 %v1070, %v1086
        %v1091 = vmul.f32 %v1087, 0.7978846
        %v1092 = vmul.f32 %v1088, 0.7978846
        %v1093 = vmul.f32 %v1089, 0.7978846
        %v1094 = vmul.f32 %v1090, 0.7978846
        %v1095 = vtanh.pop %v1091
        %v1096 = vtanh.pop %v1092
        %v1097 = vtanh.pop %v1093
        %v1098 = vtanh.pop %v1094
        %v1099 = vadd.f32 %v1095, 1.0
        %v1100 = vadd.f32 %v1096, 1.0
        %v1101 = vadd.f32 %v1097, 1.0
        %v1102 = vadd.f32 %v1098, 1.0
        %v1103 = vmul.f32 %v1071, %v1099
        %v1104 = vmul.f32 %v1072, %v1100
        %v1105 = vmul.f32 %v1073, %v1101
        %v1106 = vmul.f32 %v1074, %v1102
        %v1107 = vld [vmem:[%s5] sm:$0xff]
        %v1108 = vld [vmem:[%s5 + $0x8] sm:$0xff]
        %1110 = vset.pattern.permute.xlu0 4
        %1111 = vperm.xlu0 %1110, %v1107
        %v1112 = vpop.permute.xlu0 %1111
        %1115 = vset.pattern.permute.xlu0 4
        %1116 = vperm.xlu0 %1115, %v1108
        %v1117 = vpop.permute.xlu0 %1116
        %v1119 = vmul.f32 %v1112, %v1103
        %v1120 = vmul.f32 %v1112, %v1104
        %v1121 = vmul.f32 %v1117, %v1105
        %v1122 = vmul.f32 %v1117, %v1106
        %v1123 = vadd.f32 %v713, %v1119
        %v1124 = vadd.f32 %v715, %v1120
        %v1125 = vadd.f32 %v719, %v1121
        %v1126 = vadd.f32 %v721, %v1122
        %1127 = vrot.lane.b32.xlu0 %v1103, 17
        %v1128 = vpop.permute.xlu0 %1127
        %1129 = vrot.lane.b32.xlu0 %v1105, 17
        %v1130 = vpop.permute.xlu0 %1129
        %1131 = vrot.lane.b32.xlu0 %v1104, 17
        %v1132 = vpop.permute.xlu0 %1131
        %1133 = vrot.lane.b32.xlu0 %v1106, 17
        %v1134 = vpop.permute.xlu0 %1133
        %v1135 = vsel %vm751, %v1128, %v1132
        %v1136 = vsel %vm751, %v1130, %v1134
        %v1137 = vsel %vm751, %v1132, %v1128
        %v1138 = vsel %vm751, %v1134, %v1130
        %v1139 = vmul.f32 %v1137, %v759
        %v1140 = vmul.f32 %v1135, %v763
        %v1141 = vmul.f32 %v1138, %v759
        %v1142 = vmul.f32 %v1136, %v763
        %1143 = vset.pattern.permute.xlu0 0
        %1144 = vperm.xlu0 %1143, %v1107
        %v1145 = vpop.permute.xlu0 %1144
        %1147 = vset.pattern.permute.xlu0 0
        %1148 = vperm.xlu0 %1147, %v1108
        %v1149 = vpop.permute.xlu0 %1148
        %v1151 = vmul.f32 %v1145, %v1139
        %v1152 = vmul.f32 %v1145, %v1140
        %v1153 = vmul.f32 %v1149, %v1141
        %v1154 = vmul.f32 %v1149, %v1142
        %v1155 = vadd.f32 %v1123, %v1151
        %v1156 = vadd.f32 %v1124, %v1152
        %v1157 = vadd.f32 %v1125, %v1153
        %v1158 = vadd.f32 %v1126, %v1154
        %1159 = vrot.lane.b32.xlu0 %v1103, 16
        %v1160 = vpop.permute.xlu0 %1159
        %1161 = vrot.lane.b32.xlu0 %v1105, 16
        %v1162 = vpop.permute.xlu0 %1161
        %1163 = vrot.lane.b32.xlu0 %v1104, 16
        %v1164 = vpop.permute.xlu0 %1163
        %1165 = vrot.lane.b32.xlu0 %v1106, 16
        %v1166 = vpop.permute.xlu0 %1165
        %v1167 = vsel %vm792, %v1160, %v1164
        %v1168 = vsel %vm792, %v1162, %v1166
        %v1169 = vsel %vm792, %v1164, %v1160
        %v1170 = vsel %vm792, %v1166, %v1162
        %v1171 = vmul.f32 %v1169, %v800
        %v1172 = vmul.f32 %v1167, %v804
        %v1173 = vmul.f32 %v1170, %v800
        %v1174 = vmul.f32 %v1168, %v804
        %1175 = vset.pattern.permute.xlu0 1
        %1176 = vperm.xlu0 %1175, %v1107
        %v1177 = vpop.permute.xlu0 %1176
        %1179 = vset.pattern.permute.xlu0 1
        %1180 = vperm.xlu0 %1179, %v1108
        %v1181 = vpop.permute.xlu0 %1180
        %v1183 = vmul.f32 %v1177, %v1171
        %v1184 = vmul.f32 %v1177, %v1172
        %v1185 = vmul.f32 %v1181, %v1173
        %v1186 = vmul.f32 %v1181, %v1174
        %v1187 = vadd.f32 %v1155, %v1183
        %v1188 = vadd.f32 %v1156, %v1184
        %v1189 = vadd.f32 %v1157, %v1185
        %v1190 = vadd.f32 %v1158, %v1186
        %1191 = vrot.lane.b32.xlu0 %v1103, 15
        %v1192 = vpop.permute.xlu0 %1191
        %1193 = vrot.lane.b32.xlu0 %v1105, 15
        %v1194 = vpop.permute.xlu0 %1193
        %1195 = vrot.lane.b32.xlu0 %v1104, 15
        %v1196 = vpop.permute.xlu0 %1195
        %1197 = vrot.lane.b32.xlu0 %v1106, 15
        %v1198 = vpop.permute.xlu0 %1197
        %v1199 = vsel %vm833, %v1192, %v1196
        %v1200 = vsel %vm833, %v1194, %v1198
        %v1201 = vsel %vm833, %v1196, %v1192
        %v1202 = vsel %vm833, %v1198, %v1194
        %v1203 = vmul.f32 %v1201, %v841
        %v1204 = vmul.f32 %v1199, %v845
        %v1205 = vmul.f32 %v1202, %v841
        %v1206 = vmul.f32 %v1200, %v845
        %1207 = vset.pattern.permute.xlu0 2
        %1208 = vperm.xlu0 %1207, %v1107
        %v1209 = vpop.permute.xlu0 %1208
        %1211 = vset.pattern.permute.xlu0 2
        %1212 = vperm.xlu0 %1211, %v1108
        %v1213 = vpop.permute.xlu0 %1212
        %v1215 = vmul.f32 %v1209, %v1203
        %v1216 = vmul.f32 %v1209, %v1204
        %v1217 = vmul.f32 %v1213, %v1205
        %v1218 = vmul.f32 %v1213, %v1206
        %v1219 = vadd.f32 %v1187, %v1215
        %v1220 = vadd.f32 %v1188, %v1216
        %v1221 = vadd.f32 %v1189, %v1217
        %v1222 = vadd.f32 %v1190, %v1218
        %1223 = vrot.lane.b32.xlu0 %v1103, 1
        %v1224 = vpop.permute.xlu0 %1223
        %1225 = vrot.lane.b32.xlu0 %v1105, 1
        %v1226 = vpop.permute.xlu0 %1225
        %1227 = vrot.lane.b32.xlu0 %v1104, 1
        %v1228 = vpop.permute.xlu0 %1227
        %1229 = vrot.lane.b32.xlu0 %v1106, 1
        %v1230 = vpop.permute.xlu0 %1229
        %v1231 = vsel %vm874, %v1224, %v1228
        %v1232 = vsel %vm874, %v1226, %v1230
        %v1233 = vsel %vm874, %v1228, %v1224
        %v1234 = vsel %vm874, %v1230, %v1226
        %v1235 = vmul.f32 %v1233, %v882
        %v1236 = vmul.f32 %v1231, %v886
        %v1237 = vmul.f32 %v1234, %v882
        %v1238 = vmul.f32 %v1232, %v886
        %1239 = vset.pattern.permute.xlu0 3
        %1240 = vperm.xlu0 %1239, %v1107
        %v1241 = vpop.permute.xlu0 %1240
        %1243 = vset.pattern.permute.xlu0 3
        %1244 = vperm.xlu0 %1243, %v1108
        %v1245 = vpop.permute.xlu0 %1244
        %v1247 = vmul.f32 %v1241, %v1235
        %v1248 = vmul.f32 %v1241, %v1236
        %v1249 = vmul.f32 %v1245, %v1237
        %v1250 = vmul.f32 %v1245, %v1238
        %v1251 = vadd.f32 %v1219, %v1247
        %v1252 = vadd.f32 %v1220, %v1248
        %v1253 = vadd.f32 %v1221, %v1249
        %v1254 = vadd.f32 %v1222, %v1250
        %1255 = vrot.lane.b32.xlu0 %v1103, 127
        %v1256 = vpop.permute.xlu0 %1255
        %1257 = vrot.lane.b32.xlu0 %v1105, 127
        %v1258 = vpop.permute.xlu0 %1257
        %1259 = vrot.lane.b32.xlu0 %v1104, 127
        %v1260 = vpop.permute.xlu0 %1259
        %1261 = vrot.lane.b32.xlu0 %v1106, 127
        %v1262 = vpop.permute.xlu0 %1261
        %v1263 = vsel %vm915, %v1256, %v1260
        %v1264 = vsel %vm915, %v1258, %v1262
        %v1265 = vsel %vm915, %v1260, %v1256
        %v1266 = vsel %vm915, %v1262, %v1258
        %v1267 = vmul.f32 %v1263, %v923
        %v1268 = vmul.f32 %v1265, %v927
        %v1269 = vmul.f32 %v1264, %v923
        %v1270 = vmul.f32 %v1266, %v927
        %1271 = vset.pattern.permute.xlu0 5
        %1272 = vperm.xlu0 %1271, %v1107
        %v1273 = vpop.permute.xlu0 %1272
        %1275 = vset.pattern.permute.xlu0 5
        %1276 = vperm.xlu0 %1275, %v1108
        %v1277 = vpop.permute.xlu0 %1276
        %v1279 = vmul.f32 %v1273, %v1267
        %v1280 = vmul.f32 %v1273, %v1268
        %v1281 = vmul.f32 %v1277, %v1269
        %v1282 = vmul.f32 %v1277, %v1270
        %v1283 = vadd.f32 %v1251, %v1279
        %v1284 = vadd.f32 %v1252, %v1280
        %v1285 = vadd.f32 %v1253, %v1281
        %v1286 = vadd.f32 %v1254, %v1282
        %1287 = vrot.lane.b32.xlu0 %v1103, 113
        %v1288 = vpop.permute.xlu0 %1287
        %1289 = vrot.lane.b32.xlu0 %v1105, 113
        %v1290 = vpop.permute.xlu0 %1289
        %1291 = vrot.lane.b32.xlu0 %v1104, 113
        %v1292 = vpop.permute.xlu0 %1291
        %1293 = vrot.lane.b32.xlu0 %v1106, 113
        %v1294 = vpop.permute.xlu0 %1293
        %v1295 = vsel %vm956, %v1288, %v1292
        %v1296 = vsel %vm956, %v1290, %v1294
        %v1297 = vsel %vm956, %v1292, %v1288
        %v1298 = vsel %vm956, %v1294, %v1290
        %v1299 = vmul.f32 %v1295, %v964
        %v1300 = vmul.f32 %v1297, %v968
        %v1301 = vmul.f32 %v1296, %v964
        %v1302 = vmul.f32 %v1298, %v968
        %1303 = vset.pattern.permute.xlu0 6
        %1304 = vperm.xlu0 %1303, %v1107
        %v1305 = vpop.permute.xlu0 %1304
        %1307 = vset.pattern.permute.xlu0 6
        %1308 = vperm.xlu0 %1307, %v1108
        %v1309 = vpop.permute.xlu0 %1308
        %v1311 = vmul.f32 %v1305, %v1299
        %v1312 = vmul.f32 %v1305, %v1300
        %v1313 = vmul.f32 %v1309, %v1301
        %v1314 = vmul.f32 %v1309, %v1302
        %v1315 = vadd.f32 %v1283, %v1311
        %v1316 = vadd.f32 %v1284, %v1312
        %v1317 = vadd.f32 %v1285, %v1313
        %v1318 = vadd.f32 %v1286, %v1314
        %1319 = vrot.lane.b32.xlu0 %v1103, 112
        %v1320 = vpop.permute.xlu0 %1319
        %1321 = vrot.lane.b32.xlu0 %v1105, 112
        %v1322 = vpop.permute.xlu0 %1321
        %1323 = vrot.lane.b32.xlu0 %v1104, 112
        %v1324 = vpop.permute.xlu0 %1323
        %1325 = vrot.lane.b32.xlu0 %v1106, 112
        %v1326 = vpop.permute.xlu0 %1325
        %v1327 = vsel %vm997, %v1320, %v1324
        %v1328 = vsel %vm997, %v1322, %v1326
        %v1329 = vsel %vm997, %v1324, %v1320
        %v1330 = vsel %vm997, %v1326, %v1322
        %v1331 = vmul.f32 %v1327, %v1005
        %v1332 = vmul.f32 %v1329, %v1009
        %v1333 = vmul.f32 %v1328, %v1005
        %v1334 = vmul.f32 %v1330, %v1009
        %1335 = vset.pattern.permute.xlu0 7
        %1336 = vperm.xlu0 %1335, %v1107
        %v1337 = vpop.permute.xlu0 %1336
        %1339 = vset.pattern.permute.xlu0 7
        %1340 = vperm.xlu0 %1339, %v1108
        %v1341 = vpop.permute.xlu0 %1340
        %v1343 = vmul.f32 %v1337, %v1331
        %v1344 = vmul.f32 %v1337, %v1332
        %v1345 = vmul.f32 %v1341, %v1333
        %v1346 = vmul.f32 %v1341, %v1334
        %v1347 = vadd.f32 %v1315, %v1343
        %v1348 = vadd.f32 %v1316, %v1344
        %v1349 = vadd.f32 %v1317, %v1345
        %v1350 = vadd.f32 %v1318, %v1346
        %1351 = vrot.lane.b32.xlu0 %v1103, 111
        %v1352 = vpop.permute.xlu0 %1351
        %1353 = vrot.lane.b32.xlu0 %v1105, 111
        %v1354 = vpop.permute.xlu0 %1353
        %1355 = vrot.lane.b32.xlu0 %v1104, 111
        %v1356 = vpop.permute.xlu0 %1355
        %1357 = vrot.lane.b32.xlu0 %v1106, 111
        %v1358 = vpop.permute.xlu0 %1357
        %v1359 = vsel %vm1038, %v1352, %v1356
        %v1360 = vsel %vm1038, %v1354, %v1358
        %v1361 = vsel %vm1038, %v1356, %v1352
        %v1362 = vsel %vm1038, %v1358, %v1354
        %v1363 = vmul.f32 %v1359, %v1046
        %v1364 = vmul.f32 %v1361, %v1050
        %v1365 = vmul.f32 %v1360, %v1046
        %v1366 = vmul.f32 %v1362, %v1050
        %1367 = vset.pattern.permute.xlu0 8
        %1368 = vperm.xlu0 %1367, %v1107
        %v1369 = vpop.permute.xlu0 %1368
        %1371 = vset.pattern.permute.xlu0 8
        %1372 = vperm.xlu0 %1371, %v1108
        %v1373 = vpop.permute.xlu0 %1372
        %v1375 = vmul.f32 %v1369, %v1363
        %v1376 = vmul.f32 %v1369, %v1364
        %v1377 = vmul.f32 %v1373, %v1365
        %v1378 = vmul.f32 %v1373, %v1366
        %v1379 = vadd.f32 %v1347, %v1375
        %v1380 = vadd.f32 %v1348, %v1376
        %v1381 = vadd.f32 %v1349, %v1377
        %v1382 = vadd.f32 %v1350, %v1378
        %1383 = vst [vmem:[%s326] sm:$0xff] %v1379
        %1384 = vst [vmem:[%s326 + $0x8] sm:$0xff] %v1380
        %1385 = vst [vmem:[%s326 + $0x10] sm:$0xff] %v1381
        %1386 = vst [vmem:[%s326 + $0x18] sm:$0xff] %v1382
        %s1387 = sand.u32 %s201, 1
        %s1388 = sand.u32 %s201, 1
        %s1389 = smul.addr %s1388, 32
        %s1390 = scalar_lea.vmem [#allocation4], %s1389
        // Predicated region
        $region76: #{sfg_msa_pallas.1} parent=70 // pred_check
          %p1391 = pneg %p211
        $region77: #{sfg_msa_pallas.1} parent=70 // pred_check_branch
          %1393 = sbr.rel (%p1391) target = $region79
        $region78: #{sfg_msa_pallas.1} parent=70 // pred_region
          %s1394 = smul.u32 2, %s20
          %s1395 = smul.addr %s1394, 8
          %s1396 = scalar_lea.vmem %s8, %s1395
          // Predicated region
          $region80: #{sfg_msa_pallas.1} parent=78 // pred_check
            _
          $region81: #{sfg_msa_pallas.1} parent=78 // pred_check_branch
            %1398 = sbr.rel (0) target = $region83
          $region82: #{sfg_msa_pallas.1} parent=78 // pred_region
            // Predicated region
            $region84: #{sfg_msa_pallas.1} parent=82 // pred_check
              _
            $region85: #{sfg_msa_pallas.1} parent=82 // pred_check_branch
              %1400 = sbr.rel (0) target = $region87
            $region86: #{sfg_msa_pallas.1} parent=82 // pred_region
              loop: start=0, step=1, limit=1
              $region88: #{sfg_msa_pallas.1} parent=86 // loop_pre_header
                _
              $region89: #{sfg_msa_pallas.1} parent=86 // loop_header
                %s1402 = sphi 0, %s1406
                %p1403 = scmp.ge.s32.totalorder %s1402, 1
                %s1407 = sphi %s1390, %s1390
                %s1408 = sphi %s1396, %s1396
              $region90: #{sfg_msa_pallas.1} parent=86 // loop_header_branch
                %1405 = sbr.rel (%p1403) target = $region94
              $region91: #{sfg_msa_pallas.1} parent=86 // loop_body
                %v1409 = vld [vmem:[%s1407] sm:$0xff]
                %1410 = vst [vmem:[%s1408] sm:$0xff] %v1409
                %v1411 = vld [vmem:[%s1407 + $0x8] sm:$0xff]
                %1412 = vst [vmem:[%s1408 + $0x8] sm:$0xff] %v1411
                %v1413 = vld [vmem:[%s1407 + $0x10] sm:$0xff]
                %1414 = vst [vmem:[%s1408 + $0x20] sm:$0xff] %v1413
                %v1415 = vld [vmem:[%s1407 + $0x18] sm:$0xff]
                %1416 = vst [vmem:[%s1408 + $0x28] sm:$0xff] %v1415
              $region92: #{sfg_msa_pallas.1} parent=86 // loop_footer
                %s1406 = sadd.s32 1, %s1402
              $region93: #{sfg_msa_pallas.1} parent=86 // loop_footer_branch
                %1401 = sbr.rel target = $region89
              $region94: #{sfg_msa_pallas.1} parent=86 // loop_exit
                _
            $region87: #{sfg_msa_pallas.1} parent=82 // pred_fallthru
              _
            // Predicated region
            $region95: #{sfg_msa_pallas.1} parent=82 // pred_check
              _
            $region96: #{sfg_msa_pallas.1} parent=82 // pred_check_branch
              %1418 = sbr.rel target = $region98
            $region97: #{sfg_msa_pallas.1} parent=82 // pred_region
              _
            $region98: #{sfg_msa_pallas.1} parent=82 // pred_fallthru
              _
          $region83: #{sfg_msa_pallas.1} parent=78 // pred_fallthru
            _
          %1419 = vnop
        $region79: #{sfg_msa_pallas.1} parent=70 // pred_fallthru
          _
      $region71: #{sfg_msa_pallas.1} parent=5 // pred_fallthru
        _
      %p1420 = scmp.le.s32.totalorder 2, %s15
      // Predicated region
      $region99: #{sfg_msa_pallas.1} parent=5 // pred_check
        %p1421 = pneg %p1420
      $region100: #{sfg_msa_pallas.1} parent=5 // pred_check_branch
        %1423 = sbr.rel (%p1421) target = $region102
      $region101: #{sfg_msa_pallas.1} parent=5 // pred_region
        %s1424 = ssub.s32 %s15, 2
        // Predicated region
        $region103: #{sfg_msa_pallas.1} parent=101 // pred_check
          %p1425 = pneg %p217
        $region104: #{sfg_msa_pallas.1} parent=101 // pred_check_branch
          %1427 = sbr.rel (%p1425) target = $region106
        $region105: #{sfg_msa_pallas.1} parent=101 // pred_region
          %s1428 = sand.u32 %s202, 1
          %s1429 = sand.u32 %s202, 1
          %s1430 = smul.addr %s1429, 32
          %s1431 = scalar_lea.vmem [#allocation4], %s1430
        $region106: #{sfg_msa_pallas.1} parent=101 // pred_fallthru
          _
      $region102: #{sfg_msa_pallas.1} parent=5 // pred_fallthru
        _
    $region6: #{sfg_msa_pallas.1} parent=1 // loop_footer
      %s19 = sadd.s32 1, %s15
    $region7: #{sfg_msa_pallas.1} parent=1 // loop_footer_branch
      %14 = sbr.rel target = $region3
    $region8: #{sfg_msa_pallas.1} parent=1 // loop_exit
      _

</llo_original>
